<compile_context>
chip_gen: v7x
topology: tpu7x:2x2x1
jax: 0.10.0
libtpu: 0.0.40
codegen_flags: <defaults>
</compile_context>

<pallas_src>
import functools
import math

import numpy as np

import jax
import jax.numpy as jnp
from jax.experimental import pallas as pl
from jax.experimental.pallas import tpu as pltpu


# ----------------------------------------------------------------------------- roll-convention probe

def _detect_roll_toward_higher():
    """True if pltpu.roll(x, s, axis) moves elements toward HIGHER indices (jnp.roll convention)."""
    def k(x_ref, o_ref):
        o_ref[...] = pltpu.roll(x_ref[...], 1, axis=1)

    x = jnp.broadcast_to(jnp.arange(128, dtype=jnp.float32), (8, 128))
    out = pl.pallas_call(k, out_shape=jax.ShapeDtypeStruct((8, 128), jnp.float32))(x)
    return bool(out[0, 0] == 127.0)


try:
    _ROLL_TOWARD_HIGHER = _detect_roll_toward_higher()
except Exception:           # conservative fallback: assume jnp.roll convention
    _ROLL_TOWARD_HIGHER = True


# ----------------------------------------------------------------------------- fused TCN3 kernel

def _tcn3_kernel(x_ref, w1_ref, w2_ref, w3_ref, w4e_ref, w4o_ref, colp_ref, scal_ref,
                 o_ref, *, H, W, LANES, roll_up):
    f32 = jnp.float32

    x = x_ref[...]                        # (1, LANES): batch flattened, sample b in slot [b*W, (b+1)*W)
    w1 = w1_ref[...]                      # (H, 3)
    w2 = w2_ref[...]                      # (H, 3H)
    w3 = w3_ref[...]                      # (2H, 2H) = [w3e ; w3o]
    w3e = w3[:H, :]
    w3o = w3[H:, :]
    w4e = w4e_ref[...]                    # (1, 2H)
    w4o = w4o_ref[...]                    # (1, 2H)
    colp = colp_ref[...]                  # (H, 9): [b1 s2 h2 b2 s3 h3 b3 s4 h4]
    scal = scal_ref[...]                  # (1, 3): [s1 h1 b4]

    b1 = colp[:, 0:1]; s2 = colp[:, 1:2]; h2 = colp[:, 2:3]; b2 = colp[:, 3:4]
    s3 = colp[:, 4:5]; h3 = colp[:, 5:6]; b3 = colp[:, 6:7]
    s4 = colp[:, 7:8]; h4 = colp[:, 8:9]
    s1 = scal[:, 0:1]; h1 = scal[:, 1:2]; b4 = scal[:, 2:3]

    # Lane-position masks, built ONCE and reused by every layer (hoisted; no per-call rebuilds).
    slot = jax.lax.broadcasted_iota(jnp.int32, (1, LANES), 1) & (W - 1)   # position inside slot
    m_prev = {s: (slot >= s).astype(f32) for s in (1, 2, 4)}              # left neighbour exists
    m_next = {s: (slot < W - s).astype(f32) for s in (1, 2, 4)}           # right neighbour exists
    m_even = {s: ((slot & (s - 1)) == 0).astype(f32) for s in (2, 4)}     # even-phase columns

    def roll_r(a, s):                     # a[:, c - s]  (elements move toward higher lane index)
        return pltpu.roll(a, s if roll_up else LANES - s, axis=1)

    def roll_l(a, s):                     # a[:, c + s]  (elements move toward lower lane index)
        return pltpu.roll(a, LANES - s if roll_up else s, axis=1)

    def shift_prev(a, s):                 # left neighbour at stride s, zero at slot start
        return roll_r(a, s) * m_prev[s]

    def shift_next(a, s):                 # right neighbour at stride s, zero at slot end
        return roll_l(a, s) * m_next[s]

    def bn_conv3(a, scale, shift, w, b, s):
        # BN (folded affine) + Conv1d(k=3, pad=1) on samples living at lane stride s.
        # w packed as [tap0 | tap1 | tap2] over Cin, matching taps = [x[j-1]; x[j]; x[j+1]].
        an = a * scale + shift
        taps = jnp.concatenate([shift_prev(an, s), an, shift_next(an, s)], axis=0)
        return jnp.dot(w, taps, preferred_element_type=f32) + b

    def maxpool2(a, s):
        # MaxPool1d(2): result valid at lane stride 2s (no compaction; stale lanes are ignored).
        return jnp.maximum(a, shift_next(a, s))

    def bn_convT(a, scale, shift, w_e, w_o, b, s):
        # BN + ConvTranspose1d(k=4, stride=2, pad=1); input stride s -> output stride s//2.
        #   out[2m]   = W1 x[m] + W3 x[m-1]   (stays at lane m*s)
        #   out[2m+1] = W2 x[m] + W0 x[m+1]   (moves to lane m*s + s//2)
        an = a * scale + shift
        ev = jnp.dot(w_e, jnp.concatenate([an, shift_prev(an, s)], axis=0),
                     preferred_element_type=f32)
        od = jnp.dot(w_o, jnp.concatenate([an, shift_next(an, s)], axis=0),
                     preferred_element_type=f32)
        me = m_even[s]
        return ev * me + roll_r(od, s // 2) * (1.0 - me) + b

    y = jnp.maximum(bn_conv3(x, s1, h1, w1, b1, 1), 0.0)        # (H, LANES), stride 1
    y = maxpool2(y, 1)                                          # stride 2
    y = jnp.maximum(bn_conv3(y, s2, h2, w2, b2, 2), 0.0)        # stride 2
    y = maxpool2(y, 2)                                          # stride 4
    y = jnp.maximum(bn_convT(y, s3, h3, w3e, w3o, b3, 4), 0.0)  # stride 2
    y = bn_convT(y, s4, h4, w4e, w4o, b4, 2)                    # (1, LANES), stride 1

    o_ref[...] = jax.nn.sigmoid(y).astype(o_ref.dtype)          # one lane-dense 128-wide store


_WEIGHT_NAMES = ("w1", "w2", "w3", "w4e", "w4o", "colp", "scal")


def tcn3_forward(X, params):
    B, L = X.shape
    H = params["w1"].shape[0]
    assert L % 4 == 0 and (L & (L - 1)) == 0, "L must be a power of two divisible by 4"
    LANES = max(128, pl.cdiv(B * L, 128) * 128)
    assert LANES % L == 0

    # Pack the batch onto the lane axis: sample b occupies lanes [b*L, (b+1)*L); pad with zeros.
    x_slab = jnp.zeros((1, LANES), jnp.float32)
    x_slab = x_slab.at[0, :B * L].set(X.reshape(-1).astype(jnp.float32))

    weights = [params[n] for n in _WEIGHT_NAMES]
    kernel = functools.partial(_tcn3_kernel, H=H, W=L, LANES=LANES,
                               roll_up=_ROLL_TOWARD_HIGHER)

    out = pl.pallas_call(
        kernel,
        out_shape=jax.ShapeDtypeStruct((1, LANES), jnp.float32),
        grid=(1,),                                        # single step: overhead-bound workload
        in_specs=[pl.BlockSpec((1, LANES), lambda i: (0, 0))]
                 + [pl.BlockSpec(w.shape, lambda i: (0, 0)) for w in weights],
        out_specs=pl.BlockSpec((1, LANES), lambda i: (0, 0)),
        compiler_params=pltpu.CompilerParams(dimension_semantics=("arbitrary",)),
    )(x_slab, *weights)
    return out[0, :B * L].reshape(B, L)


# ----------------------------------------------------------------------------- parameters (PyTorch-convention) + packing

def init_canonical_params(key, hidden):
    """Parameters in PyTorch conventions: Conv1d w (Cout, Cin, K); ConvTranspose1d w (Cin, Cout, K)."""
    H = hidden

    def bn_p(k, c):
        k1, k2, k3, k4 = jax.random.split(k, 4)
        return {"gamma": 1.0 + 0.1 * jax.random.normal(k1, (c,)),
                "beta": 0.1 * jax.random.normal(k2, (c,)),
                "mean": 0.1 * jax.random.normal(k3, (c,)),
                "var": 1.0 + 0.2 * jax.random.uniform(k4, (c,))}

    def conv_p(k, cin, cout, ksz):
        k1, k2 = jax.random.split(k)
        std = 1.0 / math.sqrt(cin * ksz)
        return {"w": std * jax.random.normal(k1, (cout, cin, ksz)),
                "b": 0.05 * jax.random.normal(k2, (cout,))}

    def convT_p(k, cin, cout, ksz):
        k1, k2 = jax.random.split(k)
        std = 1.0 / math.sqrt(cin * ksz)
        return {"w": std * jax.random.normal(k1, (cin, cout, ksz)),
                "b": 0.05 * jax.random.normal(k2, (cout,))}

    ks = jax.random.split(key, 8)
    return {
        "bn1": bn_p(ks[0], 1), "c1": conv_p(ks[1], 1, H, 3),
        "bn2": bn_p(ks[2], H), "c2": conv_p(ks[3], H, H, 3),
        "bn3": bn_p(ks[4], H), "c3": convT_p(ks[5], H, H, 4),
        "bn4": bn_p(ks[6], H), "c4": convT_p(ks[7], H, 1, 4),
    }


def pack_params(cp, eps=1e-5):
    """Fold BN into per-channel affines and consolidate everything into 7 kernel-ready slabs."""
    def bn_affine(p):
        scale = p["gamma"] / jnp.sqrt(p["var"] + eps)
        shift = p["beta"] - p["mean"] * scale
        return scale.astype(jnp.float32), shift.astype(jnp.float32)        # (C,)

    def conv_flat(p):                       # (Cout, Cin, 3) -> (Cout, 3*Cin) packed [k0 | k1 | k2]
        w = p["w"]
        wf = jnp.concatenate([w[:, :, 0], w[:, :, 1], w[:, :, 2]], axis=1)
        return wf.astype(jnp.float32), p["b"].astype(jnp.float32)

    def convT_flat(p):                      # (Cin, Cout, 4) -> w_e = [W1|W3], w_o = [W2|W0]
        w = p["w"]
        Wk = [w[:, :, k].T for k in range(4)]                               # each (Cout, Cin)
        w_e = jnp.concatenate([Wk[1], Wk[3]], axis=1)
        w_o = jnp.concatenate([Wk[2], Wk[0]], axis=1)
        return w_e.astype(jnp.float32), w_o.astype(jnp.float32), p["b"].astype(jnp.float32)

    s1, h1 = bn_affine(cp["bn1"]); w1, b1 = conv_flat(cp["c1"])
    s2, h2 = bn_affine(cp["bn2"]); w2, b2 = conv_flat(cp["c2"])
    s3, h3 = bn_affine(cp["bn3"]); w3e, w3o, b3 = convT_flat(cp["c3"])
    s4, h4 = bn_affine(cp["bn4"]); w4e, w4o, b4 = convT_flat(cp["c4"])

    colp = jnp.stack([b1, s2, h2, b2, s3, h3, b3, s4, h4], axis=1)          # (H, 9)
    scal = jnp.concatenate([s1, h1, b4]).reshape(1, 3)                      # (1, 3)
    w3 = jnp.concatenate([w3e, w3o], axis=0)                                # (2H, 2H)
    return dict(w1=w1, w2=w2, w3=w3, w4e=w4e, w4o=w4o, colp=colp, scal=scal)


# ----------------------------------------------------------------------------- independent numpy reference (PyTorch eval semantics)

def ref_forward(X, cp, eps=1e-5):
    B, L = X.shape

    def bn(x, p):
        g, b, m, v = (np.asarray(p["gamma"], np.float64), np.asarray(p["beta"], np.float64),
                      np.asarray(p["mean"], np.float64), np.asarray(p["var"], np.float64))
        return (x - m[None, :, None]) / np.sqrt(v[None, :, None] + eps) * g[None, :, None] + b[None, :, None]

    def conv1d(x, w, b):                    # x: (B, Cin, L); w: (Cout, Cin, 3); padding = 1
        Bb, Cin, Lx = x.shape
        Cout, _, K = w.shape
        xp = np.zeros((Bb, Cin, Lx + 2), np.float64)
        xp[:, :, 1:Lx + 1] = x
        out = np.zeros((Bb, Cout, Lx), np.float64)
        for k in range(K):
            out += np.einsum("oi,bil->bol", w[:, :, k], xp[:, :, k:k + Lx])
        return out + b[None, :, None]

    def maxpool2(x):
        Bb, C, Lx = x.shape
        return x.reshape(Bb, C, Lx // 2, 2).max(axis=3)

    def convT(x, w, b):                     # x: (B, Cin, Lin); w: (Cin, Cout, 4); stride=2, padding=1
        Bb, Cin, Lin = x.shape
        _, Cout, K = w.shape
        Lout = (Lin - 1) * 2 - 2 + K
        out = np.zeros((Bb, Cout, Lout), np.float64)
        for i in range(Lin):
            for k in range(K):
                o = 2 * i - 1 + k
                if 0 <= o < Lout:
                    out[:, :, o] += np.einsum("bi,io->bo", x[:, :, i], w[:, :, k])
        return out + b[None, :, None]

    x = X.astype(np.float64).reshape(B, 1, L)
    x = maxpool2(np.maximum(conv1d(bn(x, cp["bn1"]), np.asarray(cp["c1"]["w"], np.float64),
                                   np.asarray(cp["c1"]["b"], np.float64)), 0.0))
    x = maxpool2(np.maximum(conv1d(bn(x, cp["bn2"]), np.asarray(cp["c2"]["w"], np.float64),
                                   np.asarray(cp["c2"]["b"], np.float64)), 0.0))
    x = np.maximum(convT(bn(x, cp["bn3"]), np.asarray(cp["c3"]["w"], np.float64),
                         np.asarray(cp["c3"]["b"], np.float64)), 0.0)
    x = convT(bn(x, cp["bn4"]), np.asarray(cp["c4"]["w"], np.float64),
              np.asarray(cp["c4"]["b"], np.float64))
    return (1.0 / (1.0 + np.exp(-x))).reshape(B, L)


# ----------------------------------------------------------------------------- main

if __name__ == "__main__":
    HIDDEN = 32          # hidden_size
    B, L = 2, 16         # batch, signal length (power of two, divisible by 4)

    key = jax.random.PRNGKey(0)
    kx, kp = jax.random.split(key)

    X = jax.random.normal(kx, (B, L), dtype=jnp.float32)
    canon = init_canonical_params(kp, HIDDEN)
    packed = pack_params(canon)

    fwd = jax.jit(tcn3_forward)
    out = jax.block_until_ready(fwd(X, packed))

    assert out.shape == (B, L), out.shape
    assert bool(jnp.all(jnp.isfinite(out)))
    assert bool(jnp.all((out >= 0.0) & (out <= 1.0)))      # sigmoid output

    # independent reference check (PyTorch eval semantics), tightened tolerance
    ref = ref_forward(np.asarray(X), jax.tree.map(np.asarray, canon))
    max_diff = float(np.max(np.abs(np.asarray(out, dtype=np.float64) - ref)))
    assert max_diff < 1e-4, max_diff

    print("KERNEL_OK")
</pallas_src>

<mosaic_0001>
module attributes {stable_mosaic.version = 11 : i64} {
  func.func @k(%arg0: memref<8x128xf32, #tpu.memory_space<vmem>>, %arg1: memref<8x128xf32, #tpu.memory_space<vmem>>) attributes {dimension_semantics = [], scalar_prefetch = 0 : i64, scratch_operands = 0 : i64, tpu.core_type = #tpu.core_type<tc>} {
    %c0 = arith.constant 0 : index
    %c0_0 = arith.constant 0 : index
    %0 = vector.load %arg0[%c0, %c0_0] : memref<8x128xf32, #tpu.memory_space<vmem>>, vector<8x128xf32>
    %c1_i32 = arith.constant 1 : i32
    %1 = tpu.dynamic_rotate %0 by %c1_i32 dim 1 : vector<8x128xf32>, i32 -> vector<8x128xf32>
    %c0_1 = arith.constant 0 : index
    %c0_2 = arith.constant 0 : index
    %2 = vector.load %arg1[%c0_1, %c0_2] : memref<8x128xf32, #tpu.memory_space<vmem>>, vector<8x128xf32>
    tpu.vector_store %arg1[%c0_1, %c0_2], %1 {strides = array<i32>} : memref<8x128xf32, #tpu.memory_space<vmem>>, vector<8x128xf32>,
    return
  }
}

module attributes {stable_mosaic.version = 11 : i64} {
  func.func @_tcn3_kernel(%arg0: i32, %arg1: memref<1x128xf32, #tpu.memory_space<vmem>>, %arg2: memref<32x3xf32, #tpu.memory_space<vmem>>, %arg3: memref<32x96xf32, #tpu.memory_space<vmem>>, %arg4: memref<64x64xf32, #tpu.memory_space<vmem>>, %arg5: memref<1x64xf32, #tpu.memory_space<vmem>>, %arg6: memref<1x64xf32, #tpu.memory_space<vmem>>, %arg7: memref<32x9xf32, #tpu.memory_space<vmem>>, %arg8: memref<1x3xf32, #tpu.memory_space<vmem>>, %arg9: memref<1x128xf32, #tpu.memory_space<vmem>>) attributes {dimension_semantics = [#tpu.dimension_semantics<arbitrary>], iteration_bounds = array<i64: 1>, scalar_prefetch = 0 : i64, scratch_operands = 0 : i64, tpu.core_type = #tpu.core_type<tc>, window_params = [{pipeline_mode = #tpu.pipeline_mode<synchronous>, transform_indices = @transform_0, window_bounds = array<i64: 1, 128>}, {pipeline_mode = #tpu.pipeline_mode<synchronous>, transform_indices = @transform_1, window_bounds = array<i64: 32, 3>}, {pipeline_mode = #tpu.pipeline_mode<synchronous>, transform_indices = @transform_2, window_bounds = array<i64: 32, 96>}, {pipeline_mode = #tpu.pipeline_mode<synchronous>, transform_indices = @transform_3, window_bounds = array<i64: 64, 64>}, {pipeline_mode = #tpu.pipeline_mode<synchronous>, transform_indices = @transform_4, window_bounds = array<i64: 1, 64>}, {pipeline_mode = #tpu.pipeline_mode<synchronous>, transform_indices = @transform_5, window_bounds = array<i64: 1, 64>}, {pipeline_mode = #tpu.pipeline_mode<synchronous>, transform_indices = @transform_6, window_bounds = array<i64: 32, 9>}, {pipeline_mode = #tpu.pipeline_mode<synchronous>, transform_indices = @transform_7, window_bounds = array<i64: 1, 3>}, {pipeline_mode = #tpu.pipeline_mode<synchronous>, transform_indices = @transform_8, window_bounds = array<i64: 1, 128>}]} {
    %c0 = arith.constant 0 : index
    %c0_0 = arith.constant 0 : index
    %0 = vector.load %arg1[%c0, %c0_0] : memref<1x128xf32, #tpu.memory_space<vmem>>, vector<1x128xf32>
    %c0_1 = arith.constant 0 : index
    %c0_2 = arith.constant 0 : index
    %1 = vector.load %arg2[%c0_1, %c0_2] : memref<32x3xf32, #tpu.memory_space<vmem>>, vector<32x3xf32>
    %c0_3 = arith.constant 0 : index
    %c0_4 = arith.constant 0 : index
    %2 = vector.load %arg3[%c0_3, %c0_4] : memref<32x96xf32, #tpu.memory_space<vmem>>, vector<32x96xf32>
    %c0_5 = arith.constant 0 : index
    %c0_6 = arith.constant 0 : index
    %3 = vector.load %arg4[%c0_5, %c0_6] : memref<64x64xf32, #tpu.memory_space<vmem>>, vector<64x64xf32>
    %4 = vector.extract_strided_slice %3 {offsets = [0, 0], sizes = [32, 64], strides = [1, 1]} : vector<64x64xf32> to vector<32x64xf32>
    %5 = vector.extract_strided_slice %3 {offsets = [32, 0], sizes = [32, 64], strides = [1, 1]} : vector<64x64xf32> to vector<32x64xf32>
    %c0_7 = arith.constant 0 : index
    %c0_8 = arith.constant 0 : index
    %6 = vector.load %arg5[%c0_7, %c0_8] : memref<1x64xf32, #tpu.memory_space<vmem>>, vector<1x64xf32>
    %c0_9 = arith.constant 0 : index
    %c0_10 = arith.constant 0 : index
    %7 = vector.load %arg6[%c0_9, %c0_10] : memref<1x64xf32, #tpu.memory_space<vmem>>, vector<1x64xf32>
    %c0_11 = arith.constant 0 : index
    %c0_12 = arith.constant 0 : index
    %8 = vector.load %arg7[%c0_11, %c0_12] : memref<32x9xf32, #tpu.memory_space<vmem>>, vector<32x9xf32>
    %c0_13 = arith.constant 0 : index
    %c0_14 = arith.constant 0 : index
    %9 = vector.load %arg8[%c0_13, %c0_14] : memref<1x3xf32, #tpu.memory_space<vmem>>, vector<1x3xf32>
    %10 = vector.extract_strided_slice %8 {offsets = [0, 0], sizes = [32, 1], strides = [1, 1]} : vector<32x9xf32> to vector<32x1xf32>
    %11 = vector.extract_strided_slice %8 {offsets = [0, 1], sizes = [32, 1], strides = [1, 1]} : vector<32x9xf32> to vector<32x1xf32>
    %12 = vector.extract_strided_slice %8 {offsets = [0, 2], sizes = [32, 1], strides = [1, 1]} : vector<32x9xf32> to vector<32x1xf32>
    %13 = vector.extract_strided_slice %8 {offsets = [0, 3], sizes = [32, 1], strides = [1, 1]} : vector<32x9xf32> to vector<32x1xf32>
    %14 = vector.extract_strided_slice %8 {offsets = [0, 4], sizes = [32, 1], strides = [1, 1]} : vector<32x9xf32> to vector<32x1xf32>
    %15 = vector.extract_strided_slice %8 {offsets = [0, 5], sizes = [32, 1], strides = [1, 1]} : vector<32x9xf32> to vector<32x1xf32>
    %16 = vector.extract_strided_slice %8 {offsets = [0, 6], sizes = [32, 1], strides = [1, 1]} : vector<32x9xf32> to vector<32x1xf32>
    %17 = vector.extract_strided_slice %8 {offsets = [0, 7], sizes = [32, 1], strides = [1, 1]} : vector<32x9xf32> to vector<32x1xf32>
    %18 = vector.extract_strided_slice %8 {offsets = [0, 8], sizes = [32, 1], strides = [1, 1]} : vector<32x9xf32> to vector<32x1xf32>
    %19 = vector.extract_strided_slice %9 {offsets = [0, 0], sizes = [1, 1], strides = [1, 1]} : vector<1x3xf32> to vector<1x1xf32>
    %20 = vector.extract_strided_slice %9 {offsets = [0, 1], sizes = [1, 1], strides = [1, 1]} : vector<1x3xf32> to vector<1x1xf32>
    %21 = vector.extract_strided_slice %9 {offsets = [0, 2], sizes = [1, 1], strides = [1, 1]} : vector<1x3xf32> to vector<1x1xf32>
    %22 = tpu.iota {dimensions = array<i32: 1>} : vector<1x128xi32>
    %c15_i32 = arith.constant 15 : i32
    %23 = vector.broadcast %c15_i32 : i32 to vector<1x128xi32>
    %24 = arith.andi %22, %23 : vector<1x128xi32>
    %c1_i32 = arith.constant 1 : i32
    %25 = vector.broadcast %c1_i32 : i32 to vector<1x128xi32>
    %26 = arith.cmpi sge, %24, %25 : vector<1x128xi32>
    %27 = arith.extui %26 : vector<1x128xi1> to vector<1x128xi32>
    %28 = arith.sitofp %27 : vector<1x128xi32> to vector<1x128xf32>
    %c2_i32 = arith.constant 2 : i32
    %29 = vector.broadcast %c2_i32 : i32 to vector<1x128xi32>
    %30 = arith.cmpi sge, %24, %29 : vector<1x128xi32>
    %31 = arith.extui %30 : vector<1x128xi1> to vector<1x128xi32>
    %32 = arith.sitofp %31 : vector<1x128xi32> to vector<1x128xf32>
    %c4_i32 = arith.constant 4 : i32
    %33 = vector.broadcast %c4_i32 : i32 to vector<1x128xi32>
    %34 = arith.cmpi sge, %24, %33 : vector<1x128xi32>
    %35 = arith.extui %34 : vector<1x128xi1> to vector<1x128xi32>
    %36 = arith.sitofp %35 : vector<1x128xi32> to vector<1x128xf32>
    %c15_i32_15 = arith.constant 15 : i32
    %37 = vector.broadcast %c15_i32_15 : i32 to vector<1x128xi32>
    %38 = arith.cmpi slt, %24, %37 : vector<1x128xi32>
    %39 = arith.extui %38 : vector<1x128xi1> to vector<1x128xi32>
    %40 = arith.sitofp %39 : vector<1x128xi32> to vector<1x128xf32>
    %c14_i32 = arith.constant 14 : i32
    %41 = vector.broadcast %c14_i32 : i32 to vector<1x128xi32>
    %42 = arith.cmpi slt, %24, %41 : vector<1x128xi32>
    %43 = arith.extui %42 : vector<1x128xi1> to vector<1x128xi32>
    %44 = arith.sitofp %43 : vector<1x128xi32> to vector<1x128xf32>
    %c12_i32 = arith.constant 12 : i32
    %45 = vector.broadcast %c12_i32 : i32 to vector<1x128xi32>
    %46 = arith.cmpi slt, %24, %45 : vector<1x128xi32>
    %47 = arith.extui %46 : vector<1x128xi1> to vector<1x128xi32>
    %48 = arith.sitofp %47 : vector<1x128xi32> to vector<1x128xf32>
    %c1_i32_16 = arith.constant 1 : i32
    %49 = vector.broadcast %c1_i32_16 : i32 to vector<1x128xi32>
    %50 = arith.andi %24, %49 : vector<1x128xi32>
    %c0_i32 = arith.constant 0 : i32
    %51 = vector.broadcast %c0_i32 : i32 to vector<1x128xi32>
    %52 = arith.cmpi eq, %50, %51 : vector<1x128xi32>
    %53 = arith.extui %52 : vector<1x128xi1> to vector<1x128xi32>
    %54 = arith.sitofp %53 : vector<1x128xi32> to vector<1x128xf32>
    %c3_i32 = arith.constant 3 : i32
    %55 = vector.broadcast %c3_i32 : i32 to vector<1x128xi32>
    %56 = arith.andi %24, %55 : vector<1x128xi32>
    %c0_i32_17 = arith.constant 0 : i32
    %57 = vector.broadcast %c0_i32_17 : i32 to vector<1x128xi32>
    %58 = arith.cmpi eq, %56, %57 : vector<1x128xi32>
    %59 = arith.extui %58 : vector<1x128xi1> to vector<1x128xi32>
    %60 = arith.sitofp %59 : vector<1x128xi32> to vector<1x128xf32>
    %61 = vector.broadcast %19 : vector<1x1xf32> to vector<1x128xf32>
    %62 = arith.mulf %0, %61 : vector<1x128xf32>
    %63 = vector.broadcast %20 : vector<1x1xf32> to vector<1x128xf32>
    %64 = arith.addf %62, %63 : vector<1x128xf32>
    %c1_i32_18 = arith.constant 1 : i32
    %65 = tpu.dynamic_rotate %64 by %c1_i32_18 dim 1 : vector<1x128xf32>, i32 -> vector<1x128xf32>
    %66 = arith.mulf %65, %28 : vector<1x128xf32>
    %c127_i32 = arith.constant 127 : i32
    %67 = tpu.dynamic_rotate %64 by %c127_i32 dim 1 : vector<1x128xf32>, i32 -> vector<1x128xf32>
    %68 = arith.mulf %67, %40 : vector<1x128xf32>
    %69 = tpu.concatenate %66, %64, %68 in 0 : vector<1x128xf32>, vector<1x128xf32>, vector<1x128xf32> -> vector<3x128xf32>
    %cst = arith.constant dense<0.000000e+00> : vector<32x128xf32>
    %70 = tpu.matmul %1, %69, %cst {dimension_numbers = #tpu.dot_dimension_numbers<[1], [0], [0], [1], [0, 0, 1, 1], [], []>} : vector<32x3xf32>, vector<3x128xf32>, vector<32x128xf32> -> vector<32x128xf32>
    %71 = vector.broadcast %10 : vector<32x1xf32> to vector<32x128xf32>
    %72 = arith.addf %70, %71 : vector<32x128xf32>
    %cst_19 = arith.constant 0.000000e+00 : f32
    %73 = vector.broadcast %cst_19 : f32 to vector<32x128xf32>
    %74 = arith.maximumf %72, %73 : vector<32x128xf32>
    %c127_i32_20 = arith.constant 127 : i32
    %75 = tpu.dynamic_rotate %74 by %c127_i32_20 dim 1 : vector<32x128xf32>, i32 -> vector<32x128xf32>
    %76 = vector.broadcast %40 : vector<1x128xf32> to vector<32x128xf32>
    %77 = arith.mulf %75, %76 : vector<32x128xf32>
    %78 = arith.maximumf %74, %77 : vector<32x128xf32>
    %79 = vector.broadcast %11 : vector<32x1xf32> to vector<32x128xf32>
    %80 = arith.mulf %78, %79 : vector<32x128xf32>
    %81 = vector.broadcast %12 : vector<32x1xf32> to vector<32x128xf32>
    %82 = arith.addf %80, %81 : vector<32x128xf32>
    %c2_i32_21 = arith.constant 2 : i32
    %83 = tpu.dynamic_rotate %82 by %c2_i32_21 dim 1 : vector<32x128xf32>, i32 -> vector<32x128xf32>
    %84 = vector.broadcast %32 : vector<1x128xf32> to vector<32x128xf32>
    %85 = arith.mulf %83, %84 : vector<32x128xf32>
    %c126_i32 = arith.constant 126 : i32
    %86 = tpu.dynamic_rotate %82 by %c126_i32 dim 1 : vector<32x128xf32>, i32 -> vector<32x128xf32>
    %87 = vector.broadcast %44 : vector<1x128xf32> to vector<32x128xf32>
    %88 = arith.mulf %86, %87 : vector<32x128xf32>
    %89 = tpu.concatenate %85, %82, %88 in 0 : vector<32x128xf32>, vector<32x128xf32>, vector<32x128xf32> -> vector<96x128xf32>
    %cst_22 = arith.constant dense<0.000000e+00> : vector<32x128xf32>
    %90 = tpu.matmul %2, %89, %cst_22 {dimension_numbers = #tpu.dot_dimension_numbers<[1], [0], [0], [1], [0, 0, 1, 1], [], []>} : vector<32x96xf32>, vector<96x128xf32>, vector<32x128xf32> -> vector<32x128xf32>
    %91 = vector.broadcast %13 : vector<32x1xf32> to vector<32x128xf32>
    %92 = arith.addf %90, %91 : vector<32x128xf32>
    %cst_23 = arith.constant 0.000000e+00 : f32
    %93 = vector.broadcast %cst_23 : f32 to vector<32x128xf32>
    %94 = arith.maximumf %92, %93 : vector<32x128xf32>
    %c126_i32_24 = arith.constant 126 : i32
    %95 = tpu.dynamic_rotate %94 by %c126_i32_24 dim 1 : vector<32x128xf32>, i32 -> vector<32x128xf32>
    %96 = vector.broadcast %44 : vector<1x128xf32> to vector<32x128xf32>
    %97 = arith.mulf %95, %96 : vector<32x128xf32>
    %98 = arith.maximumf %94, %97 : vector<32x128xf32>
    %99 = vector.broadcast %14 : vector<32x1xf32> to vector<32x128xf32>
    %100 = arith.mulf %98, %99 : vector<32x128xf32>
    %101 = vector.broadcast %15 : vector<32x1xf32> to vector<32x128xf32>
    %102 = arith.addf %100, %101 : vector<32x128xf32>
    %c4_i32_25 = arith.constant 4 : i32
    %103 = tpu.dynamic_rotate %102 by %c4_i32_25 dim 1 : vector<32x128xf32>, i32 -> vector<32x128xf32>
    %104 = vector.broadcast %36 : vector<1x128xf32> to vector<32x128xf32>
    %105 = arith.mulf %103, %104 : vector<32x128xf32>
    %106 = tpu.concatenate %102, %105 in 0 : vector<32x128xf32>, vector<32x128xf32> -> vector<64x128xf32>
    %cst_26 = arith.constant dense<0.000000e+00> : vector<32x128xf32>
    %107 = tpu.matmul %4, %106, %cst_26 {dimension_numbers = #tpu.dot_dimension_numbers<[1], [0], [0], [1], [0, 0, 1, 1], [], []>} : vector<32x64xf32>, vector<64x128xf32>, vector<32x128xf32> -> vector<32x128xf32>
    %c124_i32 = arith.constant 124 : i32
    %108 = tpu.dynamic_rotate %102 by %c124_i32 dim 1 : vector<32x128xf32>, i32 -> vector<32x128xf32>
    %109 = vector.broadcast %48 : vector<1x128xf32> to vector<32x128xf32>
    %110 = arith.mulf %108, %109 : vector<32x128xf32>
    %111 = tpu.concatenate %102, %110 in 0 : vector<32x128xf32>, vector<32x128xf32> -> vector<64x128xf32>
    %cst_27 = arith.constant dense<0.000000e+00> : vector<32x128xf32>
    %112 = tpu.matmul %5, %111, %cst_27 {dimension_numbers = #tpu.dot_dimension_numbers<[1], [0], [0], [1], [0, 0, 1, 1], [], []>} : vector<32x64xf32>, vector<64x128xf32>, vector<32x128xf32> -> vector<32x128xf32>
    %113 = vector.broadcast %60 : vector<1x128xf32> to vector<32x128xf32>
    %114 = arith.mulf %107, %113 : vector<32x128xf32>
    %c2_i32_28 = arith.constant 2 : i32
    %115 = tpu.dynamic_rotate %112 by %c2_i32_28 dim 1 : vector<32x128xf32>, i32 -> vector<32x128xf32>
    %cst_29 = arith.constant 1.000000e+00 : f32
    %116 = vector.broadcast %cst_29 : f32 to vector<1x128xf32>
    %117 = arith.subf %116, %60 : vector<1x128xf32>
    %118 = vector.broadcast %117 : vector<1x128xf32> to vector<32x128xf32>
    %119 = arith.mulf %115, %118 : vector<32x128xf32>
    %120 = arith.addf %114, %119 : vector<32x128xf32>
    %121 = vector.broadcast %16 : vector<32x1xf32> to vector<32x128xf32>
    %122 = arith.addf %120, %121 : vector<32x128xf32>
    %cst_30 = arith.constant 0.000000e+00 : f32
    %123 = vector.broadcast %cst_30 : f32 to vector<32x128xf32>
    %124 = arith.maximumf %122, %123 : vector<32x128xf32>
    %125 = vector.broadcast %17 : vector<32x1xf32> to vector<32x128xf32>
    %126 = arith.mulf %124, %125 : vector<32x128xf32>
    %127 = vector.broadcast %18 : vector<32x1xf32> to vector<32x128xf32>
    %128 = arith.addf %126, %127 : vector<32x128xf32>
    %c2_i32_31 = arith.constant 2 : i32
    %129 = tpu.dynamic_rotate %128 by %c2_i32_31 dim 1 : vector<32x128xf32>, i32 -> vector<32x128xf32>
    %130 = vector.broadcast %32 : vector<1x128xf32> to vector<32x128xf32>
    %131 = arith.mulf %129, %130 : vector<32x128xf32>
    %132 = tpu.concatenate %128, %131 in 0 : vector<32x128xf32>, vector<32x128xf32> -> vector<64x128xf32>
    %cst_32 = arith.constant dense<0.000000e+00> : vector<1x128xf32>
    %133 = tpu.matmul %6, %132, %cst_32 {dimension_numbers = #tpu.dot_dimension_numbers<[1], [0], [0], [1], [0, 0, 1, 1], [], []>} : vector<1x64xf32>, vector<64x128xf32>, vector<1x128xf32> -> vector<1x128xf32>
    %c126_i32_33 = arith.constant 126 : i32
    %134 = tpu.dynamic_rotate %128 by %c126_i32_33 dim 1 : vector<32x128xf32>, i32 -> vector<32x128xf32>
    %135 = vector.broadcast %44 : vector<1x128xf32> to vector<32x128xf32>
    %136 = arith.mulf %134, %135 : vector<32x128xf32>
    %137 = tpu.concatenate %128, %136 in 0 : vector<32x128xf32>, vector<32x128xf32> -> vector<64x128xf32>
    %cst_34 = arith.constant dense<0.000000e+00> : vector<1x128xf32>
    %138 = tpu.matmul %7, %137, %cst_34 {dimension_numbers = #tpu.dot_dimension_numbers<[1], [0], [0], [1], [0, 0, 1, 1], [], []>} : vector<1x64xf32>, vector<64x128xf32>, vector<1x128xf32> -> vector<1x128xf32>
    %139 = arith.mulf %133, %54 : vector<1x128xf32>
    %c1_i32_35 = arith.constant 1 : i32
    %140 = tpu.dynamic_rotate %138 by %c1_i32_35 dim 1 : vector<1x128xf32>, i32 -> vector<1x128xf32>
    %cst_36 = arith.constant 1.000000e+00 : f32
    %141 = vector.broadcast %cst_36 : f32 to vector<1x128xf32>
    %142 = arith.subf %141, %54 : vector<1x128xf32>
    %143 = arith.mulf %140, %142 : vector<1x128xf32>
    %144 = arith.addf %139, %143 : vector<1x128xf32>
    %145 = vector.broadcast %21 : vector<1x1xf32> to vector<1x128xf32>
    %146 = arith.addf %144, %145 : vector<1x128xf32>
    %147 = arith.negf %146 : vector<1x128xf32>
    %148 = math.exp %147 : vector<1x128xf32>
    %cst_37 = arith.constant 1.000000e+00 : f32
    %149 = vector.broadcast %cst_37 : f32 to vector<1x128xf32>
    %150 = arith.addf %149, %148 : vector<1x128xf32>
    %151 = arith.divf %149, %150 : vector<1x128xf32>
    %c0_38 = arith.constant 0 : index
    %c0_39 = arith.constant 0 : index
    %152 = vector.load %arg9[%c0_38, %c0_39] : memref<1x128xf32, #tpu.memory_space<vmem>>, vector<1x128xf32>
    tpu.vector_store %arg9[%c0_38, %c0_39], %151 {strides = array<i32>} : memref<1x128xf32, #tpu.memory_space<vmem>>, vector<1x128xf32>,
    return
  }
  func.func @transform_0(%arg0: i32) -> (i32, i32) {
    %c0_i32 = arith.constant 0 : i32
    %c0_i32_0 = arith.constant 0 : i32
    %c0_i32_1 = arith.constant 0 : i32
    return %c0_i32, %c0_i32_0 : i32, i32
  }
  func.func @transform_1(%arg0: i32) -> (i32, i32) {
    %c0_i32 = arith.constant 0 : i32
    %c0_i32_0 = arith.constant 0 : i32
    %c0_i32_1 = arith.constant 0 : i32
    return %c0_i32, %c0_i32_0 : i32, i32
  }
  func.func @transform_2(%arg0: i32) -> (i32, i32) {
    %c0_i32 = arith.constant 0 : i32
    %c0_i32_0 = arith.constant 0 : i32
    %c0_i32_1 = arith.constant 0 : i32
    return %c0_i32, %c0_i32_0 : i32, i32
  }
  func.func @transform_3(%arg0: i32) -> (i32, i32) {
    %c0_i32 = arith.constant 0 : i32
    %c0_i32_0 = arith.constant 0 : i32
    %c0_i32_1 = arith.constant 0 : i32
    return %c0_i32, %c0_i32_0 : i32, i32
  }
  func.func @transform_4(%arg0: i32) -> (i32, i32) {
    %c0_i32 = arith.constant 0 : i32
    %c0_i32_0 = arith.constant 0 : i32
    %c0_i32_1 = arith.constant 0 : i32
    return %c0_i32, %c0_i32_0 : i32, i32
  }
  func.func @transform_5(%arg0: i32) -> (i32, i32) {
    %c0_i32 = arith.constant 0 : i32
    %c0_i32_0 = arith.constant 0 : i32
    %c0_i32_1 = arith.constant 0 : i32
    return %c0_i32, %c0_i32_0 : i32, i32
  }
  func.func @transform_6(%arg0: i32) -> (i32, i32) {
    %c0_i32 = arith.constant 0 : i32
    %c0_i32_0 = arith.constant 0 : i32
    %c0_i32_1 = arith.constant 0 : i32
    return %c0_i32, %c0_i32_0 : i32, i32
  }
  func.func @transform_7(%arg0: i32) -> (i32, i32) {
    %c0_i32 = arith.constant 0 : i32
    %c0_i32_0 = arith.constant 0 : i32
    %c0_i32_1 = arith.constant 0 : i32
    return %c0_i32, %c0_i32_0 : i32, i32
  }
  func.func @transform_8(%arg0: i32) -> (i32, i32) {
    %c0_i32 = arith.constant 0 : i32
    %c0_i32_0 = arith.constant 0 : i32
    %c0_i32_1 = arith.constant 0 : i32
    return %c0_i32, %c0_i32_0 : i32, i32
  }
}

</mosaic_0001>

<llo_original>
// kernel: tpu_custom_call.1
$region0: #{tpu_custom_call.1}
  #allocation0 [shape = 'u32[]', space=smem, size = 0x4, offset = 0x4, fixed_abs, tag = 'smem constant byte address 0x4 - core index']
  #allocation1 [shape = 'u32[144,128]{1,0:T(1,128)}', space=vmem, size = 0x12000, scoped, tag = 'internal scratch']
  %s0 = inlined_call_operand.hbm [shape: f32[8,128], index: 0, kind: input, shape index: {}]
  %s1 = inlined_call_operand.hbm [shape: f32[8,128], index: 1, kind: output, shape index: {}]
  %s2 = sld [smem:[#allocation0]]
  $region18: #{tpu_custom_call.1} parent=0
    _
  %s4 = ssub.s32 1, %s2
  %s5 = scalar_select 0, %s4, %s2
  $region1: #{tpu_custom_call.1} parent=0
    #allocation2 [shape = 'u8[4096]{0}', space=vmem, size = 0x1000, scoped, tag = 'input window, operand 0, single buffered']
    #allocation3 [shape = 's32[1]{0}', space=sflag, size = 0x4, scoped, tag = 'scoped memory for tpu_custom_call.1']
    #allocation4 [shape = 's32[1]{0}', space=sflag, size = 0x4, scoped, tag = 'scoped memory for tpu_custom_call.1']
    #allocation5 [shape = 'u8[4096]{0}', space=vmem, size = 0x1000, scoped, tag = 'output window, operand 0, single buffered']
    %6 = vsyncpa [#allocation3], 0
    %7 = vsyncpa [#allocation4], 0
    // Predicated region
    $region2: #{tpu_custom_call.1} parent=1 // pred_check
      _
    $region3: #{tpu_custom_call.1} parent=1 // pred_check_branch
      %9 = sbr.rel (0) target = $region5
    $region4: #{tpu_custom_call.1} parent=1 // pred_region
      %s11 = ssub.s32 128, 128
      %12 = vsyncadd [#allocation3], %s11
      %s14 = sshll.u32 [#allocation2], 4
      %s15 = int_to_ptr.vmem [resolvable:$true] %s14
      %17 = dma.hbm_to_vmem [thread:$0]  %s0, 128, %s15, [#allocation3]
    $region5: #{tpu_custom_call.1} parent=1 // pred_fallthru
      _
    // Predicated region
    $region6: #{tpu_custom_call.1} parent=1 // pred_check
      _
    $region7: #{tpu_custom_call.1} parent=1 // pred_check_branch
      %19 = sbr.rel (0) target = $region9
    $region8: #{tpu_custom_call.1} parent=1 // pred_region
      %20 = dma.done [#allocation3], 128
    $region9: #{tpu_custom_call.1} parent=1 // pred_fallthru
      _
    %v21 = vld [vmem:[#allocation2] sm:$0xff]
    %22 = vrot.lane.b32.xlu0 %v21, 1
    %v23 = vpop.permute.xlu0 %22
    %24 = vst [vmem:[#allocation5] sm:$0xff] %v23
    // Predicated region
    $region10: #{tpu_custom_call.1} parent=1 // pred_check
      _
    $region11: #{tpu_custom_call.1} parent=1 // pred_check_branch
      %26 = sbr.rel (0) target = $region13
    $region12: #{tpu_custom_call.1} parent=1 // pred_region
      %s28 = ssub.s32 128, 128
      %29 = vsyncadd [#allocation4], %s28
      %s31 = sshll.u32 [#allocation5], 4
      %s32 = int_to_ptr.vmem [resolvable:$true] %s31
      %34 = dma.vmem_to_hbm [thread:$0]  %s32, 128, %s1, [#allocation4]
    $region13: #{tpu_custom_call.1} parent=1 // pred_fallthru
      _
    // Predicated region
    $region14: #{tpu_custom_call.1} parent=1 // pred_check
      _
    $region15: #{tpu_custom_call.1} parent=1 // pred_check_branch
      %36 = sbr.rel (0) target = $region17
    $region16: #{tpu_custom_call.1} parent=1 // pred_region
      %37 = dma.done [#allocation4], 128
    $region17: #{tpu_custom_call.1} parent=1 // pred_fallthru
      _
    %38 = vsyncpa [#allocation3], 1
    %39 = vsyncpa [#allocation4], 1

// kernel: squeeze.1
$region0: #{squeeze.1}
  %s0 = inlined_call_operand.vmem [shape: f32[32], index: 0, kind: input, shape index: {}]
  %s1 = inlined_call_operand.hbm [shape: f32[2,16], index: 1, kind: output, shape index: {}]
  $region1: #{squeeze.1} parent=0
    #allocation0 [shape = 'u8[1024]{0}', space=vmem, size = 0x400, scoped, tag = 'operand span for operand 1']
    #allocation1 [shape = 's32[1]{0}', space=sflag, size = 0x4, scoped, tag = 'scoped memory for squeeze.1']
    #allocation2 [shape = 'u8[4096]{0}', space=vmem, size = 0x1000, scoped, tag = 'scoped mem for output reshape']
    #allocation3 [shape = 'u8[4096]{0}', space=vmem, size = 0x1000, scoped, tag = 'scoped mem for input reshape']
    %2 = vsyncpa [#allocation1], 0
    %s4 = sshllo.u32 0, 1
    %v5 = vld [vmem:[%s0] sm:%s4]
    %6 = vst [vmem:[#allocation3] sm:%s4] %v5
    %v7 = vld [vmem:[#allocation3] sm:$0x1]
    %vm8 = vcmask 130048
    %9 = vst.msk [vmem:[#allocation2] sm:$0x1] %vm8, %v7
    %v10 = vld [vmem:[#allocation3] sm:$0x1]
    %11 = vrot.lane.b32.xlu0 %v10, 112
    %v12 = vpop.permute.xlu0 %11
    %vm13 = vcmask 130048
    %s14 = scalar_lea.vmem [#allocation2], 1
    %15 = vst.msk [vmem:[%s14] sm:$0x1] %vm13, %v12
    %s17 = sshllo.u32 0, 2
    %v19 = vld [vmem:[#allocation2] sm:%s17]
    %s20 = sshllo.u32 0, 2
    %21 = vst [vmem:[#allocation0] sm:%s20] %v19
    %s23 = ssub.s32 32, 32
    %24 = vsyncadd [#allocation1], %s23
    %s26 = sshll.u32 [#allocation0], 4
    %s27 = int_to_ptr.vmem [resolvable:$true] %s26
    %29 = dma.vmem_to_hbm [thread:$0]  %s27, 32, %s1, [#allocation1]
    %30 = dma.done [#allocation1], 32
    %31 = vsyncpa [#allocation1], 1

// kernel: tcn3_forward.1
$region0: #{tcn3_forward.1}
  #allocation0 [shape = 'u32[]', space=smem, size = 0x4, offset = 0x4, fixed_abs, tag = 'smem constant byte address 0x4 - core index']
  #allocation1 [shape = 'u32[144,128]{1,0:T(1,128)}', space=vmem, size = 0x12000, scoped, tag = 'internal scratch']
  %s0 = inlined_call_operand.vmem [shape: f32[1,128], index: 0, kind: input, shape index: {}]
  %s1 = inlined_call_operand.vmem [shape: f32[32,3], index: 1, kind: input, shape index: {}]
  %s2 = inlined_call_operand.vmem [shape: f32[32,96], index: 2, kind: input, shape index: {}]
  %s3 = inlined_call_operand.vmem [shape: f32[64,64], index: 3, kind: input, shape index: {}]
  %s4 = inlined_call_operand.vmem [shape: f32[1,64], index: 4, kind: input, shape index: {}]
  %s5 = inlined_call_operand.vmem [shape: f32[1,64], index: 5, kind: input, shape index: {}]
  %s6 = inlined_call_operand.vmem [shape: f32[32,9], index: 6, kind: input, shape index: {}]
  %s7 = inlined_call_operand.vmem [shape: f32[1,3], index: 7, kind: input, shape index: {}]
  %s8 = inlined_call_operand.vmem [shape: f32[1,128], index: 8, kind: output, shape index: {}]
  %s9 = sld [smem:[#allocation0]]
  $region42: #{tcn3_forward.1} parent=0
    _
  %s11 = ssub.s32 1, %s9
  %s12 = scalar_select 0, %s11, %s9
  // Predicated region
  $region2: #{tcn3_forward.1} parent=0 // pred_check
    _
  $region3: #{tcn3_forward.1} parent=0 // pred_check_branch
    %14 = sbr.rel (0) target = $region5
  $region4: #{tcn3_forward.1} parent=0 // pred_region
    _
  $region5: #{tcn3_forward.1} parent=0 // pred_fallthru
    _
  // Predicated region
  $region6: #{tcn3_forward.1} parent=0 // pred_check
    _
  $region7: #{tcn3_forward.1} parent=0 // pred_check_branch
    %16 = sbr.rel (0) target = $region9
  $region8: #{tcn3_forward.1} parent=0 // pred_region
    _
  $region9: #{tcn3_forward.1} parent=0 // pred_fallthru
    _
  // Predicated region
  $region10: #{tcn3_forward.1} parent=0 // pred_check
    _
  $region11: #{tcn3_forward.1} parent=0 // pred_check_branch
    %18 = sbr.rel (0) target = $region13
  $region12: #{tcn3_forward.1} parent=0 // pred_region
    _
  $region13: #{tcn3_forward.1} parent=0 // pred_fallthru
    _
  // Predicated region
  $region14: #{tcn3_forward.1} parent=0 // pred_check
    _
  $region15: #{tcn3_forward.1} parent=0 // pred_check_branch
    %20 = sbr.rel (0) target = $region17
  $region16: #{tcn3_forward.1} parent=0 // pred_region
    _
  $region17: #{tcn3_forward.1} parent=0 // pred_fallthru
    _
  // Predicated region
  $region18: #{tcn3_forward.1} parent=0 // pred_check
    _
  $region19: #{tcn3_forward.1} parent=0 // pred_check_branch
    %22 = sbr.rel (0) target = $region21
  $region20: #{tcn3_forward.1} parent=0 // pred_region
    _
  $region21: #{tcn3_forward.1} parent=0 // pred_fallthru
    _
  // Predicated region
  $region22: #{tcn3_forward.1} parent=0 // pred_check
    _
  $region23: #{tcn3_forward.1} parent=0 // pred_check_branch
    %24 = sbr.rel (0) target = $region25
  $region24: #{tcn3_forward.1} parent=0 // pred_region
    _
  $region25: #{tcn3_forward.1} parent=0 // pred_fallthru
    _
  // Predicated region
  $region26: #{tcn3_forward.1} parent=0 // pred_check
    _
  $region27: #{tcn3_forward.1} parent=0 // pred_check_branch
    %26 = sbr.rel (0) target = $region29
  $region28: #{tcn3_forward.1} parent=0 // pred_region
    _
  $region29: #{tcn3_forward.1} parent=0 // pred_fallthru
    _
  // Predicated region
  $region30: #{tcn3_forward.1} parent=0 // pred_check
    _
  $region31: #{tcn3_forward.1} parent=0 // pred_check_branch
    %28 = sbr.rel (0) target = $region33
  $region32: #{tcn3_forward.1} parent=0 // pred_region
    _
  $region33: #{tcn3_forward.1} parent=0 // pred_fallthru
    _
  %v29 = vld [vmem:[%s0] sm:$0x1]
  %v30 = vld [vmem:[%s1] sm:$0xff]
  %v31 = vld [vmem:[%s1 + $0x8] sm:$0xff]
  %v32 = vld [vmem:[%s1 + $0x10] sm:$0xff]
  %v33 = vld [vmem:[%s1 + $0x18] sm:$0xff]
  %v34 = vld [vmem:[%s2] sm:$0xff]
  %v35 = vld [vmem:[%s2 + $0x8] sm:$0xff]
  %v36 = vld [vmem:[%s2 + $0x10] sm:$0xff]
  %v37 = vld [vmem:[%s2 + $0x18] sm:$0xff]
  %v38 = vld [vmem:[%s3] sm:$0xff]
  %v39 = vld [vmem:[%s3 + $0x8] sm:$0xff]
  %v40 = vld [vmem:[%s3 + $0x10] sm:$0xff]
  %v41 = vld [vmem:[%s3 + $0x18] sm:$0xff]
  %v42 = vld [vmem:[%s3 + $0x20] sm:$0xff]
  %v43 = vld [vmem:[%s3 + $0x28] sm:$0xff]
  %v44 = vld [vmem:[%s3 + $0x30] sm:$0xff]
  %v45 = vld [vmem:[%s3 + $0x38] sm:$0xff]
  %v46 = vld [vmem:[%s4] sm:$0x1]
  %v47 = vld [vmem:[%s5] sm:$0x1]
  %v48 = vld [vmem:[%s6] sm:$0xff]
  %v49 = vld [vmem:[%s6 + $0x8] sm:$0xff]
  %v50 = vld [vmem:[%s6 + $0x10] sm:$0xff]
  %v51 = vld [vmem:[%s6 + $0x18] sm:$0xff]
  %v52 = vld [vmem:[%s7] sm:$0x1]
  %v53 = vlaneseq
  %v54 = vand.u32 %v53, 127
  %v55 = vand.u32 %v54, 15
  %vm56 = vcmp.ge.s32.totalorder %v55, 1
  %v57 = vsel %vm56, 1, 0
  %v58 = vcvt.s32.f32 %v57
  %vm59 = vcmp.ge.s32.totalorder %v55, 2
  %v60 = vsel %vm59, 1, 0
  %v61 = vcvt.s32.f32 %v60
  %vm62 = vcmp.ge.s32.totalorder %v55, 4
  %v63 = vsel %vm62, 1, 0
  %v64 = vcvt.s32.f32 %v63
  %vm65 = vcmp.lt.s32.totalorder %v55, 15
  %v66 = vsel %vm65, 1, 0
  %v67 = vcvt.s32.f32 %v66
  %vm68 = vcmp.lt.s32.totalorder %v55, 14
  %v69 = vsel %vm68, 1, 0
  %v70 = vcvt.s32.f32 %v69
  %vm71 = vcmp.lt.s32.totalorder %v55, 12
  %v72 = vsel %vm71, 1, 0
  %v73 = vcvt.s32.f32 %v72
  %v74 = vand.u32 %v55, 1
  %vm75 = vcmp.eq.s32.totalorder %v74, 0
  %v76 = vsel %vm75, 1, 0
  %v77 = vcvt.s32.f32 %v76
  %v78 = vand.u32 %v55, 3
  %vm79 = vcmp.eq.s32.totalorder %v78, 0
  %v80 = vsel %vm79, 1, 0
  %v81 = vcvt.s32.f32 %v80
  %83 = vset.pattern.permute.xlu0 0
  %84 = vperm.xlu0 %83, %v52
  %v85 = vpop.permute.xlu0 %84
  %v87 = vlaneseq
  %v88 = vshrl.u32 %v87, 7
  %v89 = vsub.s32 0, %v88
  %v90 = vrot.slane %v85, %v89
  %v91 = vmul.f32 %v29, %v90
  %92 = vset.pattern.permute.xlu0 1
  %93 = vperm.xlu0 %92, %v52
  %v94 = vpop.permute.xlu0 %93
  %v96 = vlaneseq
  %v97 = vshrl.u32 %v96, 7
  %v98 = vsub.s32 0, %v97
  %v99 = vrot.slane %v94, %v98
  %v100 = vadd.f32 %v91, %v99
  %101 = vrot.lane.b32.xlu0 %v100, 1
  %v102 = vpop.permute.xlu0 %101
  %v103 = vmul.f32 %v102, %v58
  %104 = vrot.lane.b32.xlu0 %v100, 127
  %v105 = vpop.permute.xlu0 %104
  %v106 = vmul.f32 %v105, %v67
  %v108 = vlaneseq
  %v109 = vshrl.u32 %v108, 7
  %v110 = vsub.s32 0, %v109
  %v111 = vrot.slane %v100, %v110
  %v114 = vrot.slane %v106, 6
  %vm116 = vcmask 1040384
  %v117 = vsel %vm116, %v103, %v111
  %vm118 = vcmask 1041408
  %v119 = vsel %vm118, %v117, %v114
  %121 = vset.pattern.permute.xlu0 0
  %122 = vperm.xlu0 %121, %v48
  %v123 = vpop.permute.xlu0 %122
  %126 = vset.pattern.permute.xlu0 0
  %127 = vperm.xlu0 %126, %v49
  %v128 = vpop.permute.xlu0 %127
  %131 = vset.pattern.permute.xlu0 0
  %132 = vperm.xlu0 %131, %v50
  %v133 = vpop.permute.xlu0 %132
  %136 = vset.pattern.permute.xlu0 0
  %137 = vperm.xlu0 %136, %v51
  %v138 = vpop.permute.xlu0 %137
  %vm140 = vcmask 23552
  %v142 = vsel %vm140, %v30, 0
  %v145 = vsel %vm140, %v31, 0
  %v148 = vsel %vm140, %v32, 0
  %v151 = vsel %vm140, %v33, 0
  %vm153 = vcmask 1042432
  %v155 = vsel %vm153, %v119, 0
  %157 = vmatprep.subr.mxu0 0.0
  %158 = vmatpush1.msra.mxu0 %v155
  %159 = vmatprep.subr.mxu0 0.0
  %160 = vmatpush1.msra.mxu0 0.0
  %161 = vmatprep.subr.mxu0 0.0
  %162 = vmatpush1.msra.mxu0 0.0
  %163 = vmatprep.subr.mxu0 0.0
  %164 = vmatpush1.msra.mxu0 0.0
  %165 = vmatprep.subr.mxu0 0.0
  %166 = vmatpush1.msra.mxu0 0.0
  %167 = vmatprep.subr.mxu0 0.0
  %168 = vmatpush1.msra.mxu0 0.0
  %169 = vmatprep.subr.mxu0 0.0
  %170 = vmatpush1.msra.mxu0 0.0
  %171 = vmatprep.subr.mxu0 0.0
  %172 = vmatpush1.msra.mxu0 0.0
  %173 = vmatprep.subr.mxu0 0.0
  %174 = vmatpush1.msra.mxu0 0.0
  %175 = vmatprep.subr.mxu0 0.0
  %176 = vmatpush1.msra.mxu0 0.0
  %177 = vmatprep.subr.mxu0 0.0
  %178 = vmatpush1.msra.mxu0 0.0
  %179 = vmatprep.subr.mxu0 0.0
  %180 = vmatpush1.msra.mxu0 0.0
  %181 = vmatprep.subr.mxu0 0.0
  %182 = vmatpush1.msra.mxu0 0.0
  %183 = vmatprep.subr.mxu0 0.0
  %184 = vmatpush1.msra.mxu0 0.0
  %185 = vmatprep.subr.mxu0 0.0
  %186 = vmatpush1.msra.mxu0 0.0
  %187 = vmatprep.subr.mxu0 0.0
  %188 = vmatpush1.msra.mxu0 0.0
  %189 = vmatprep.subr.mxu0 0.0
  %190 = vmatpush1.msra.mxu0 0.0
  %191 = vmatprep.subr.mxu0 0.0
  %192 = vmatpush1.msra.mxu0 0.0
  %193 = vmatprep.subr.mxu0 0.0
  %194 = vmatpush1.msra.mxu0 0.0
  %195 = vmatprep.subr.mxu0 0.0
  %196 = vmatpush1.msra.mxu0 0.0
  %197 = vmatprep.subr.mxu0 0.0
  %198 = vmatpush1.msra.mxu0 0.0
  %199 = vmatprep.subr.mxu0 0.0
  %200 = vmatpush1.msra.mxu0 0.0
  %201 = vmatprep.subr.mxu0 0.0
  %202 = vmatpush1.msra.mxu0 0.0
  %203 = vmatprep.subr.mxu0 0.0
  %204 = vmatpush1.msra.mxu0 0.0
  %205 = vmatprep.subr.mxu0 0.0
  %206 = vmatpush1.msra.mxu0 0.0
  %207 = vmatprep.subr.mxu0 0.0
  %208 = vmatpush1.msra.mxu0 0.0
  %209 = vmatprep.subr.mxu0 0.0
  %210 = vmatpush1.msra.mxu0 0.0
  %211 = vmatprep.subr.mxu0 0.0
  %212 = vmatpush1.msra.mxu0 0.0
  %213 = vmatprep.subr.mxu0 0.0
  %214 = vmatpush1.msra.mxu0 0.0
  %215 = vmatprep.subr.mxu0 0.0
  %216 = vmatpush1.msra.mxu0 0.0
  %217 = vmatprep.subr.mxu0 0.0
  %218 = vmatpush1.msra.mxu0 0.0
  %219 = vmatprep.subr.mxu0 0.0
  %220 = vmatpush1.msra.mxu0 0.0
  %221 = vmatprep.mubr.f32.mxu0 0.0
  %222 = vmatmul.mubr.f32.gmra.mrb[0].mxu0 %v142
  %v223 = vpop.f32.mrb[0].mxu0
  %v224 = vadd.f32 %v123, %v223
  %v225 = vpop.f32.mrb[0].mxu0
  %226 = vmatprep.mubr.f32.mxu0 0.0
  %227 = vmatmul.mubr.f32.gmra.mrb[0].mxu0 %v145
  %v228 = vpop.f32.mrb[0].mxu0
  %v229 = vadd.f32 %v128, %v228
  %v230 = vpop.f32.mrb[0].mxu0
  %231 = vmatprep.mubr.f32.mxu0 0.0
  %232 = vmatmul.mubr.f32.gmra.mrb[0].mxu0 %v148
  %v233 = vpop.f32.mrb[0].mxu0
  %v234 = vadd.f32 %v133, %v233
  %v235 = vpop.f32.mrb[0].mxu0
  %236 = vmatprep.mubr.f32.mxu0 0.0
  %237 = vmatmul.mubr.f32.gmra.mrb[0].mxu0 %v151
  %v238 = vpop.f32.mrb[0].mxu0
  %v239 = vadd.f32 %v138, %v238
  %v240 = vpop.f32.mrb[0].mxu0
  %241 = vdwg.mxu0
  %v242 = vmax.f32 %v224, 0.0
  %v243 = vmax.f32 %v229, 0.0
  %v244 = vmax.f32 %v234, 0.0
  %v245 = vmax.f32 %v239, 0.0
  %246 = vrot.lane.b32.xlu0 %v242, 127
  %v247 = vpop.permute.xlu0 %246
  %248 = vrot.lane.b32.xlu0 %v243, 127
  %v249 = vpop.permute.xlu0 %248
  %250 = vrot.lane.b32.xlu0 %v244, 127
  %v251 = vpop.permute.xlu0 %250
  %252 = vrot.lane.b32.xlu0 %v245, 127
  %v253 = vpop.permute.xlu0 %252
  %v254 = vmul.f32 %v247, %v67
  %v255 = vmul.f32 %v249, %v67
  %v256 = vmul.f32 %v251, %v67
  %v257 = vmul.f32 %v253, %v67
  %v258 = vmax.f32 %v242, %v254
  %v259 = vmax.f32 %v243, %v255
  %v260 = vmax.f32 %v244, %v256
  %v261 = vmax.f32 %v245, %v257
  %262 = vset.pattern.permute.xlu0 1
  %263 = vperm.xlu0 %262, %v48
  %v264 = vpop.permute.xlu0 %263
  %266 = vset.pattern.permute.xlu0 1
  %267 = vperm.xlu0 %266, %v49
  %v268 = vpop.permute.xlu0 %267
  %270 = vset.pattern.permute.xlu0 1
  %271 = vperm.xlu0 %270, %v50
  %v272 = vpop.permute.xlu0 %271
  %274 = vset.pattern.permute.xlu0 1
  %275 = vperm.xlu0 %274, %v51
  %v276 = vpop.permute.xlu0 %275
  %v278 = vmul.f32 %v258, %v264
  %v279 = vmul.f32 %v259, %v268
  %v280 = vmul.f32 %v260, %v272
  %v281 = vmul.f32 %v261, %v276
  %282 = vset.pattern.permute.xlu0 2
  %283 = vperm.xlu0 %282, %v48
  %v284 = vpop.permute.xlu0 %283
  %286 = vset.pattern.permute.xlu0 2
  %287 = vperm.xlu0 %286, %v49
  %v288 = vpop.permute.xlu0 %287
  %290 = vset.pattern.permute.xlu0 2
  %291 = vperm.xlu0 %290, %v50
  %v292 = vpop.permute.xlu0 %291
  %294 = vset.pattern.permute.xlu0 2
  %295 = vperm.xlu0 %294, %v51
  %v296 = vpop.permute.xlu0 %295
  %v298 = vadd.f32 %v278, %v284
  %v299 = vadd.f32 %v279, %v288
  %v300 = vadd.f32 %v280, %v292
  %v301 = vadd.f32 %v281, %v296
  %302 = vrot.lane.b32.xlu0 %v298, 2
  %v303 = vpop.permute.xlu0 %302
  %304 = vrot.lane.b32.xlu0 %v299, 2
  %v305 = vpop.permute.xlu0 %304
  %306 = vrot.lane.b32.xlu0 %v300, 2
  %v307 = vpop.permute.xlu0 %306
  %308 = vrot.lane.b32.xlu0 %v301, 2
  %v309 = vpop.permute.xlu0 %308
  %v310 = vmul.f32 %v303, %v61
  %v311 = vmul.f32 %v305, %v61
  %v312 = vmul.f32 %v307, %v61
  %v313 = vmul.f32 %v309, %v61
  %314 = vrot.lane.b32.xlu0 %v298, 126
  %v315 = vpop.permute.xlu0 %314
  %316 = vrot.lane.b32.xlu0 %v299, 126
  %v317 = vpop.permute.xlu0 %316
  %318 = vrot.lane.b32.xlu0 %v300, 126
  %v319 = vpop.permute.xlu0 %318
  %320 = vrot.lane.b32.xlu0 %v301, 126
  %v321 = vpop.permute.xlu0 %320
  %v322 = vmul.f32 %v315, %v70
  %v323 = vmul.f32 %v317, %v70
  %v324 = vmul.f32 %v319, %v70
  %v325 = vmul.f32 %v321, %v70
  %326 = vset.pattern.permute.xlu0 3
  %327 = vperm.xlu0 %326, %v48
  %v328 = vpop.permute.xlu0 %327
  %330 = vset.pattern.permute.xlu0 3
  %331 = vperm.xlu0 %330, %v49
  %v332 = vpop.permute.xlu0 %331
  %334 = vset.pattern.permute.xlu0 3
  %335 = vperm.xlu0 %334, %v50
  %v336 = vpop.permute.xlu0 %335
  %338 = vset.pattern.permute.xlu0 3
  %339 = vperm.xlu0 %338, %v51
  %v340 = vpop.permute.xlu0 %339
  %vm342 = vcmask 785408
  %v344 = vsel %vm342, %v34, 0
  %v347 = vsel %vm342, %v35, 0
  %v350 = vsel %vm342, %v36, 0
  %v353 = vsel %vm342, %v37, 0
  %355 = vmatprep.subr.mxu0 0.0
  %356 = vmatpush1.msra.mxu0 %v310
  %357 = vmatprep.subr.mxu0 0.0
  %358 = vmatpush1.msra.mxu0 %v311
  %359 = vmatprep.subr.mxu0 0.0
  %360 = vmatpush1.msra.mxu0 %v312
  %361 = vmatprep.subr.mxu0 0.0
  %362 = vmatpush1.msra.mxu0 %v313
  %363 = vmatprep.subr.mxu0 0.0
  %364 = vmatpush1.msra.mxu0 %v298
  %365 = vmatprep.subr.mxu0 0.0
  %366 = vmatpush1.msra.mxu0 %v299
  %367 = vmatprep.subr.mxu0 0.0
  %368 = vmatpush1.msra.mxu0 %v300
  %369 = vmatprep.subr.mxu0 0.0
  %370 = vmatpush1.msra.mxu0 %v301
  %371 = vmatprep.subr.mxu0 0.0
  %372 = vmatpush1.msra.mxu0 %v322
  %373 = vmatprep.subr.mxu0 0.0
  %374 = vmatpush1.msra.mxu0 %v323
  %375 = vmatprep.subr.mxu0 0.0
  %376 = vmatpush1.msra.mxu0 %v324
  %377 = vmatprep.subr.mxu0 0.0
  %378 = vmatpush1.msra.mxu0 %v325
  %379 = vmatprep.subr.mxu0 0.0
  %380 = vmatpush1.msra.mxu0 0.0
  %381 = vmatprep.subr.mxu0 0.0
  %382 = vmatpush1.msra.mxu0 0.0
  %383 = vmatprep.subr.mxu0 0.0
  %384 = vmatpush1.msra.mxu0 0.0
  %385 = vmatprep.subr.mxu0 0.0
  %386 = vmatpush1.msra.mxu0 0.0
  %387 = vmatprep.subr.mxu0 0.0
  %388 = vmatpush1.msra.mxu0 0.0
  %389 = vmatprep.subr.mxu0 0.0
  %390 = vmatpush1.msra.mxu0 0.0
  %391 = vmatprep.subr.mxu0 0.0
  %392 = vmatpush1.msra.mxu0 0.0
  %393 = vmatprep.subr.mxu0 0.0
  %394 = vmatpush1.msra.mxu0 0.0
  %395 = vmatprep.subr.mxu0 0.0
  %396 = vmatpush1.msra.mxu0 0.0
  %397 = vmatprep.subr.mxu0 0.0
  %398 = vmatpush1.msra.mxu0 0.0
  %399 = vmatprep.subr.mxu0 0.0
  %400 = vmatpush1.msra.mxu0 0.0
  %401 = vmatprep.subr.mxu0 0.0
  %402 = vmatpush1.msra.mxu0 0.0
  %403 = vmatprep.subr.mxu0 0.0
  %404 = vmatpush1.msra.mxu0 0.0
  %405 = vmatprep.subr.mxu0 0.0
  %406 = vmatpush1.msra.mxu0 0.0
  %407 = vmatprep.subr.mxu0 0.0
  %408 = vmatpush1.msra.mxu0 0.0
  %409 = vmatprep.subr.mxu0 0.0
  %410 = vmatpush1.msra.mxu0 0.0
  %411 = vmatprep.subr.mxu0 0.0
  %412 = vmatpush1.msra.mxu0 0.0
  %413 = vmatprep.subr.mxu0 0.0
  %414 = vmatpush1.msra.mxu0 0.0
  %415 = vmatprep.subr.mxu0 0.0
  %416 = vmatpush1.msra.mxu0 0.0
  %417 = vmatprep.subr.mxu0 0.0
  %418 = vmatpush1.msra.mxu0 0.0
  %419 = vmatprep.mubr.f32.mxu0 0.0
  %420 = vmatmul.mubr.f32.gmra.mrb[0].mxu0 %v344
  %v421 = vpop.f32.mrb[0].mxu0
  %v422 = vadd.f32 %v328, %v421
  %v423 = vpop.f32.mrb[0].mxu0
  %424 = vmatprep.mubr.f32.mxu0 0.0
  %425 = vmatmul.mubr.f32.gmra.mrb[0].mxu0 %v347
  %v426 = vpop.f32.mrb[0].mxu0
  %v427 = vadd.f32 %v332, %v426
  %v428 = vpop.f32.mrb[0].mxu0
  %429 = vmatprep.mubr.f32.mxu0 0.0
  %430 = vmatmul.mubr.f32.gmra.mrb[0].mxu0 %v350
  %v431 = vpop.f32.mrb[0].mxu0
  %v432 = vadd.f32 %v336, %v431
  %v433 = vpop.f32.mrb[0].mxu0
  %434 = vmatprep.mubr.f32.mxu0 0.0
  %435 = vmatmul.mubr.f32.gmra.mrb[0].mxu0 %v353
  %v436 = vpop.f32.mrb[0].mxu0
  %v437 = vadd.f32 %v340, %v436
  %v438 = vpop.f32.mrb[0].mxu0
  %439 = vdwg.mxu0
  %v440 = vmax.f32 %v422, 0.0
  %v441 = vmax.f32 %v427, 0.0
  %v442 = vmax.f32 %v432, 0.0
  %v443 = vmax.f32 %v437, 0.0
  %444 = vrot.lane.b32.xlu0 %v440, 126
  %v445 = vpop.permute.xlu0 %444
  %446 = vrot.lane.b32.xlu0 %v441, 126
  %v447 = vpop.permute.xlu0 %446
  %448 = vrot.lane.b32.xlu0 %v442, 126
  %v449 = vpop.permute.xlu0 %448
  %450 = vrot.lane.b32.xlu0 %v443, 126
  %v451 = vpop.permute.xlu0 %450
  %v452 = vmul.f32 %v445, %v70
  %v453 = vmul.f32 %v447, %v70
  %v454 = vmul.f32 %v449, %v70
  %v455 = vmul.f32 %v451, %v70
  %v456 = vmax.f32 %v440, %v452
  %v457 = vmax.f32 %v441, %v453
  %v458 = vmax.f32 %v442, %v454
  %v459 = vmax.f32 %v443, %v455
  %460 = vset.pattern.permute.xlu0 4
  %461 = vperm.xlu0 %460, %v48
  %v462 = vpop.permute.xlu0 %461
  %464 = vset.pattern.permute.xlu0 4
  %465 = vperm.xlu0 %464, %v49
  %v466 = vpop.permute.xlu0 %465
  %468 = vset.pattern.permute.xlu0 4
  %469 = vperm.xlu0 %468, %v50
  %v470 = vpop.permute.xlu0 %469
  %472 = vset.pattern.permute.xlu0 4
  %473 = vperm.xlu0 %472, %v51
  %v474 = vpop.permute.xlu0 %473
  %v476 = vmul.f32 %v456, %v462
  %v477 = vmul.f32 %v457, %v466
  %v478 = vmul.f32 %v458, %v470
  %v479 = vmul.f32 %v459, %v474
  %480 = vset.pattern.permute.xlu0 5
  %481 = vperm.xlu0 %480, %v48
  %v482 = vpop.permute.xlu0 %481
  %484 = vset.pattern.permute.xlu0 5
  %485 = vperm.xlu0 %484, %v49
  %v486 = vpop.permute.xlu0 %485
  %488 = vset.pattern.permute.xlu0 5
  %489 = vperm.xlu0 %488, %v50
  %v490 = vpop.permute.xlu0 %489
  %492 = vset.pattern.permute.xlu0 5
  %493 = vperm.xlu0 %492, %v51
  %v494 = vpop.permute.xlu0 %493
  %v496 = vadd.f32 %v476, %v482
  %v497 = vadd.f32 %v477, %v486
  %v498 = vadd.f32 %v478, %v490
  %v499 = vadd.f32 %v479, %v494
  %500 = vrot.lane.b32.xlu0 %v496, 4
  %v501 = vpop.permute.xlu0 %500
  %502 = vrot.lane.b32.xlu0 %v497, 4
  %v503 = vpop.permute.xlu0 %502
  %504 = vrot.lane.b32.xlu0 %v498, 4
  %v505 = vpop.permute.xlu0 %504
  %506 = vrot.lane.b32.xlu0 %v499, 4
  %v507 = vpop.permute.xlu0 %506
  %v508 = vmul.f32 %v501, %v64
  %v509 = vmul.f32 %v503, %v64
  %v510 = vmul.f32 %v505, %v64
  %v511 = vmul.f32 %v507, %v64
  %vm512 = vcmask 523264
  %v514 = vsel %vm512, %v38, 0
  %v517 = vsel %vm512, %v39, 0
  %v520 = vsel %vm512, %v40, 0
  %v523 = vsel %vm512, %v41, 0
  %525 = vmatprep.subr.mxu0 0.0
  %526 = vmatpush1.msra.mxu0 %v496
  %527 = vmatprep.subr.mxu0 0.0
  %528 = vmatpush1.msra.mxu0 %v497
  %529 = vmatprep.subr.mxu0 0.0
  %530 = vmatpush1.msra.mxu0 %v498
  %531 = vmatprep.subr.mxu0 0.0
  %532 = vmatpush1.msra.mxu0 %v499
  %533 = vmatprep.subr.mxu0 0.0
  %534 = vmatpush1.msra.mxu0 %v508
  %535 = vmatprep.subr.mxu0 0.0
  %536 = vmatpush1.msra.mxu0 %v509
  %537 = vmatprep.subr.mxu0 0.0
  %538 = vmatpush1.msra.mxu0 %v510
  %539 = vmatprep.subr.mxu0 0.0
  %540 = vmatpush1.msra.mxu0 %v511
  %541 = vmatprep.subr.mxu0 0.0
  %542 = vmatpush1.msra.mxu0 0.0
  %543 = vmatprep.subr.mxu0 0.0
  %544 = vmatpush1.msra.mxu0 0.0
  %545 = vmatprep.subr.mxu0 0.0
  %546 = vmatpush1.msra.mxu0 0.0
  %547 = vmatprep.subr.mxu0 0.0
  %548 = vmatpush1.msra.mxu0 0.0
  %549 = vmatprep.subr.mxu0 0.0
  %550 = vmatpush1.msra.mxu0 0.0
  %551 = vmatprep.subr.mxu0 0.0
  %552 = vmatpush1.msra.mxu0 0.0
  %553 = vmatprep.subr.mxu0 0.0
  %554 = vmatpush1.msra.mxu0 0.0
  %555 = vmatprep.subr.mxu0 0.0
  %556 = vmatpush1.msra.mxu0 0.0
  %557 = vmatprep.subr.mxu0 0.0
  %558 = vmatpush1.msra.mxu0 0.0
  %559 = vmatprep.subr.mxu0 0.0
  %560 = vmatpush1.msra.mxu0 0.0
  %561 = vmatprep.subr.mxu0 0.0
  %562 = vmatpush1.msra.mxu0 0.0
  %563 = vmatprep.subr.mxu0 0.0
  %564 = vmatpush1.msra.mxu0 0.0
  %565 = vmatprep.subr.mxu0 0.0
  %566 = vmatpush1.msra.mxu0 0.0
  %567 = vmatprep.subr.mxu0 0.0
  %568 = vmatpush1.msra.mxu0 0.0
  %569 = vmatprep.subr.mxu0 0.0
  %570 = vmatpush1.msra.mxu0 0.0
  %571 = vmatprep.subr.mxu0 0.0
  %572 = vmatpush1.msra.mxu0 0.0
  %573 = vmatprep.subr.mxu0 0.0
  %574 = vmatpush1.msra.mxu0 0.0
  %575 = vmatprep.subr.mxu0 0.0
  %576 = vmatpush1.msra.mxu0 0.0
  %577 = vmatprep.subr.mxu0 0.0
  %578 = vmatpush1.msra.mxu0 0.0
  %579 = vmatprep.subr.mxu0 0.0
  %580 = vmatpush1.msra.mxu0 0.0
  %581 = vmatprep.subr.mxu0 0.0
  %582 = vmatpush1.msra.mxu0 0.0
  %583 = vmatprep.subr.mxu0 0.0
  %584 = vmatpush1.msra.mxu0 0.0
  %585 = vmatprep.subr.mxu0 0.0
  %586 = vmatpush1.msra.mxu0 0.0
  %587 = vmatprep.subr.mxu0 0.0
  %588 = vmatpush1.msra.mxu0 0.0
  %589 = vmatprep.mubr.f32.mxu0 0.0
  %590 = vmatmul.mubr.f32.gmra.mrb[0].mxu0 %v514
  %v591 = vpop.f32.mrb[0].mxu0
  %v592 = vadd.f32 0.0, %v591
  %v593 = vpop.f32.mrb[0].mxu0
  %594 = vmatprep.mubr.f32.mxu0 0.0
  %595 = vmatmul.mubr.f32.gmra.mrb[0].mxu0 %v517
  %v596 = vpop.f32.mrb[0].mxu0
  %v597 = vadd.f32 0.0, %v596
  %v598 = vpop.f32.mrb[0].mxu0
  %599 = vmatprep.mubr.f32.mxu0 0.0
  %600 = vmatmul.mubr.f32.gmra.mrb[0].mxu0 %v520
  %v601 = vpop.f32.mrb[0].mxu0
  %v602 = vadd.f32 0.0, %v601
  %v603 = vpop.f32.mrb[0].mxu0
  %604 = vmatprep.mubr.f32.mxu0 0.0
  %605 = vmatmul.mubr.f32.gmra.mrb[0].mxu0 %v523
  %v606 = vpop.f32.mrb[0].mxu0
  %v607 = vadd.f32 0.0, %v606
  %v608 = vpop.f32.mrb[0].mxu0
  %609 = vdwg.mxu0
  %610 = vrot.lane.b32.xlu0 %v496, 124
  %v611 = vpop.permute.xlu0 %610
  %612 = vrot.lane.b32.xlu0 %v497, 124
  %v613 = vpop.permute.xlu0 %612
  %614 = vrot.lane.b32.xlu0 %v498, 124
  %v615 = vpop.permute.xlu0 %614
  %616 = vrot.lane.b32.xlu0 %v499, 124
  %v617 = vpop.permute.xlu0 %616
  %v618 = vmul.f32 %v611, %v73
  %v619 = vmul.f32 %v613, %v73
  %v620 = vmul.f32 %v615, %v73
  %v621 = vmul.f32 %v617, %v73
  %v623 = vsel %vm512, %v42, 0
  %v626 = vsel %vm512, %v43, 0
  %v629 = vsel %vm512, %v44, 0
  %v632 = vsel %vm512, %v45, 0
  %634 = vmatprep.subr.mxu0 0.0
  %635 = vmatpush1.msra.mxu0 %v496
  %636 = vmatprep.subr.mxu0 0.0
  %637 = vmatpush1.msra.mxu0 %v497
  %638 = vmatprep.subr.mxu0 0.0
  %639 = vmatpush1.msra.mxu0 %v498
  %640 = vmatprep.subr.mxu0 0.0
  %641 = vmatpush1.msra.mxu0 %v499
  %642 = vmatprep.subr.mxu0 0.0
  %643 = vmatpush1.msra.mxu0 %v618
  %644 = vmatprep.subr.mxu0 0.0
  %645 = vmatpush1.msra.mxu0 %v619
  %646 = vmatprep.subr.mxu0 0.0
  %647 = vmatpush1.msra.mxu0 %v620
  %648 = vmatprep.subr.mxu0 0.0
  %649 = vmatpush1.msra.mxu0 %v621
  %650 = vmatprep.subr.mxu0 0.0
  %651 = vmatpush1.msra.mxu0 0.0
  %652 = vmatprep.subr.mxu0 0.0
  %653 = vmatpush1.msra.mxu0 0.0
  %654 = vmatprep.subr.mxu0 0.0
  %655 = vmatpush1.msra.mxu0 0.0
  %656 = vmatprep.subr.mxu0 0.0
  %657 = vmatpush1.msra.mxu0 0.0
  %658 = vmatprep.subr.mxu0 0.0
  %659 = vmatpush1.msra.mxu0 0.0
  %660 = vmatprep.subr.mxu0 0.0
  %661 = vmatpush1.msra.mxu0 0.0
  %662 = vmatprep.subr.mxu0 0.0
  %663 = vmatpush1.msra.mxu0 0.0
  %664 = vmatprep.subr.mxu0 0.0
  %665 = vmatpush1.msra.mxu0 0.0
  %666 = vmatprep.subr.mxu0 0.0
  %667 = vmatpush1.msra.mxu0 0.0
  %668 = vmatprep.subr.mxu0 0.0
  %669 = vmatpush1.msra.mxu0 0.0
  %670 = vmatprep.subr.mxu0 0.0
  %671 = vmatpush1.msra.mxu0 0.0
  %672 = vmatprep.subr.mxu0 0.0
  %673 = vmatpush1.msra.mxu0 0.0
  %674 = vmatprep.subr.mxu0 0.0
  %675 = vmatpush1.msra.mxu0 0.0
  %676 = vmatprep.subr.mxu0 0.0
  %677 = vmatpush1.msra.mxu0 0.0
  %678 = vmatprep.subr.mxu0 0.0
  %679 = vmatpush1.msra.mxu0 0.0
  %680 = vmatprep.subr.mxu0 0.0
  %681 = vmatpush1.msra.mxu0 0.0
  %682 = vmatprep.subr.mxu0 0.0
  %683 = vmatpush1.msra.mxu0 0.0
  %684 = vmatprep.subr.mxu0 0.0
  %685 = vmatpush1.msra.mxu0 0.0
  %686 = vmatprep.subr.mxu0 0.0
  %687 = vmatpush1.msra.mxu0 0.0
  %688 = vmatprep.subr.mxu0 0.0
  %689 = vmatpush1.msra.mxu0 0.0
  %690 = vmatprep.subr.mxu0 0.0
  %691 = vmatpush1.msra.mxu0 0.0
  %692 = vmatprep.subr.mxu0 0.0
  %693 = vmatpush1.msra.mxu0 0.0
  %694 = vmatprep.subr.mxu0 0.0
  %695 = vmatpush1.msra.mxu0 0.0
  %696 = vmatprep.subr.mxu0 0.0
  %697 = vmatpush1.msra.mxu0 0.0
  %698 = vmatprep.mubr.f32.mxu0 0.0
  %699 = vmatmul.mubr.f32.gmra.mrb[0].mxu0 %v623
  %v700 = vpop.f32.mrb[0].mxu0
  %v701 = vadd.f32 0.0, %v700
  %v702 = vpop.f32.mrb[0].mxu0
  %703 = vmatprep.mubr.f32.mxu0 0.0
  %704 = vmatmul.mubr.f32.gmra.mrb[0].mxu0 %v626
  %v705 = vpop.f32.mrb[0].mxu0
  %v706 = vadd.f32 0.0, %v705
  %v707 = vpop.f32.mrb[0].mxu0
  %708 = vmatprep.mubr.f32.mxu0 0.0
  %709 = vmatmul.mubr.f32.gmra.mrb[0].mxu0 %v629
  %v710 = vpop.f32.mrb[0].mxu0
  %v711 = vadd.f32 0.0, %v710
  %v712 = vpop.f32.mrb[0].mxu0
  %713 = vmatprep.mubr.f32.mxu0 0.0
  %714 = vmatmul.mubr.f32.gmra.mrb[0].mxu0 %v632
  %v715 = vpop.f32.mrb[0].mxu0
  %v716 = vadd.f32 0.0, %v715
  %v717 = vpop.f32.mrb[0].mxu0
  %718 = vdwg.mxu0
  %v719 = vmul.f32 %v592, %v81
  %v720 = vmul.f32 %v597, %v81
  %v721 = vmul.f32 %v602, %v81
  %v722 = vmul.f32 %v607, %v81
  %723 = vrot.lane.b32.xlu0 %v701, 2
  %v724 = vpop.permute.xlu0 %723
  %725 = vrot.lane.b32.xlu0 %v706, 2
  %v726 = vpop.permute.xlu0 %725
  %727 = vrot.lane.b32.xlu0 %v711, 2
  %v728 = vpop.permute.xlu0 %727
  %729 = vrot.lane.b32.xlu0 %v716, 2
  %v730 = vpop.permute.xlu0 %729
  %v731 = vsub.f32 1.0, %v81
  %v732 = vmul.f32 %v724, %v731
  %v733 = vmul.f32 %v726, %v731
  %v734 = vmul.f32 %v728, %v731
  %v735 = vmul.f32 %v730, %v731
  %v736 = vadd.f32 %v719, %v732
  %v737 = vadd.f32 %v720, %v733
  %v738 = vadd.f32 %v721, %v734
  %v739 = vadd.f32 %v722, %v735
  %740 = vset.pattern.permute.xlu0 6
  %741 = vperm.xlu0 %740, %v48
  %v742 = vpop.permute.xlu0 %741
  %744 = vset.pattern.permute.xlu0 6
  %745 = vperm.xlu0 %744, %v49
  %v746 = vpop.permute.xlu0 %745
  %748 = vset.pattern.permute.xlu0 6
  %749 = vperm.xlu0 %748, %v50
  %v750 = vpop.permute.xlu0 %749
  %752 = vset.pattern.permute.xlu0 6
  %753 = vperm.xlu0 %752, %v51
  %v754 = vpop.permute.xlu0 %753
  %v756 = vadd.f32 %v736, %v742
  %v757 = vadd.f32 %v737, %v746
  %v758 = vadd.f32 %v738, %v750
  %v759 = vadd.f32 %v739, %v754
  %v760 = vmax.f32 %v756, 0.0
  %v761 = vmax.f32 %v757, 0.0
  %v762 = vmax.f32 %v758, 0.0
  %v763 = vmax.f32 %v759, 0.0
  %764 = vset.pattern.permute.xlu0 7
  %765 = vperm.xlu0 %764, %v48
  %v766 = vpop.permute.xlu0 %765
  %768 = vset.pattern.permute.xlu0 7
  %769 = vperm.xlu0 %768, %v49
  %v770 = vpop.permute.xlu0 %769
  %772 = vset.pattern.permute.xlu0 7
  %773 = vperm.xlu0 %772, %v50
  %v774 = vpop.permute.xlu0 %773
  %776 = vset.pattern.permute.xlu0 7
  %777 = vperm.xlu0 %776, %v51
  %v778 = vpop.permute.xlu0 %777
  %v780 = vmul.f32 %v760, %v766
  %v781 = vmul.f32 %v761, %v770
  %v782 = vmul.f32 %v762, %v774
  %v783 = vmul.f32 %v763, %v778
  %784 = vset.pattern.permute.xlu0 8
  %785 = vperm.xlu0 %784, %v48
  %v786 = vpop.permute.xlu0 %785
  %788 = vset.pattern.permute.xlu0 8
  %789 = vperm.xlu0 %788, %v49
  %v790 = vpop.permute.xlu0 %789
  %792 = vset.pattern.permute.xlu0 8
  %793 = vperm.xlu0 %792, %v50
  %v794 = vpop.permute.xlu0 %793
  %796 = vset.pattern.permute.xlu0 8
  %797 = vperm.xlu0 %796, %v51
  %v798 = vpop.permute.xlu0 %797
  %v800 = vadd.f32 %v780, %v786
  %v801 = vadd.f32 %v781, %v790
  %v802 = vadd.f32 %v782, %v794
  %v803 = vadd.f32 %v783, %v798
  %804 = vrot.lane.b32.xlu0 %v800, 2
  %v805 = vpop.permute.xlu0 %804
  %806 = vrot.lane.b32.xlu0 %v801, 2
  %v807 = vpop.permute.xlu0 %806
  %808 = vrot.lane.b32.xlu0 %v802, 2
  %v809 = vpop.permute.xlu0 %808
  %810 = vrot.lane.b32.xlu0 %v803, 2
  %v811 = vpop.permute.xlu0 %810
  %v812 = vmul.f32 %v805, %v61
  %v813 = vmul.f32 %v807, %v61
  %v814 = vmul.f32 %v809, %v61
  %v815 = vmul.f32 %v811, %v61
  %v817 = vsel %vm512, %v46, 0
  %819 = vmatprep.subr.mxu0 0.0
  %820 = vmatpush1.msra.mxu0 %v800
  %821 = vmatprep.subr.mxu0 0.0
  %822 = vmatpush1.msra.mxu0 %v801
  %823 = vmatprep.subr.mxu0 0.0
  %824 = vmatpush1.msra.mxu0 %v802
  %825 = vmatprep.subr.mxu0 0.0
  %826 = vmatpush1.msra.mxu0 %v803
  %827 = vmatprep.subr.mxu0 0.0
  %828 = vmatpush1.msra.mxu0 %v812
  %829 = vmatprep.subr.mxu0 0.0
  %830 = vmatpush1.msra.mxu0 %v813
  %831 = vmatprep.subr.mxu0 0.0
  %832 = vmatpush1.msra.mxu0 %v814
  %833 = vmatprep.subr.mxu0 0.0
  %834 = vmatpush1.msra.mxu0 %v815
  %835 = vmatprep.subr.mxu0 0.0
  %836 = vmatpush1.msra.mxu0 0.0
  %837 = vmatprep.subr.mxu0 0.0
  %838 = vmatpush1.msra.mxu0 0.0
  %839 = vmatprep.subr.mxu0 0.0
  %840 = vmatpush1.msra.mxu0 0.0
  %841 = vmatprep.subr.mxu0 0.0
  %842 = vmatpush1.msra.mxu0 0.0
  %843 = vmatprep.subr.mxu0 0.0
  %844 = vmatpush1.msra.mxu0 0.0
  %845 = vmatprep.subr.mxu0 0.0
  %846 = vmatpush1.msra.mxu0 0.0
  %847 = vmatprep.subr.mxu0 0.0
  %848 = vmatpush1.msra.mxu0 0.0
  %849 = vmatprep.subr.mxu0 0.0
  %850 = vmatpush1.msra.mxu0 0.0
  %851 = vmatprep.subr.mxu0 0.0
  %852 = vmatpush1.msra.mxu0 0.0
  %853 = vmatprep.subr.mxu0 0.0
  %854 = vmatpush1.msra.mxu0 0.0
  %855 = vmatprep.subr.mxu0 0.0
  %856 = vmatpush1.msra.mxu0 0.0
  %857 = vmatprep.subr.mxu0 0.0
  %858 = vmatpush1.msra.mxu0 0.0
  %859 = vmatprep.subr.mxu0 0.0
  %860 = vmatpush1.msra.mxu0 0.0
  %861 = vmatprep.subr.mxu0 0.0
  %862 = vmatpush1.msra.mxu0 0.0
  %863 = vmatprep.subr.mxu0 0.0
  %864 = vmatpush1.msra.mxu0 0.0
  %865 = vmatprep.subr.mxu0 0.0
  %866 = vmatpush1.msra.mxu0 0.0
  %867 = vmatprep.subr.mxu0 0.0
  %868 = vmatpush1.msra.mxu0 0.0
  %869 = vmatprep.subr.mxu0 0.0
  %870 = vmatpush1.msra.mxu0 0.0
  %871 = vmatprep.subr.mxu0 0.0
  %872 = vmatpush1.msra.mxu0 0.0
  %873 = vmatprep.subr.mxu0 0.0
  %874 = vmatpush1.msra.mxu0 0.0
  %875 = vmatprep.subr.mxu0 0.0
  %876 = vmatpush1.msra.mxu0 0.0
  %877 = vmatprep.subr.mxu0 0.0
  %878 = vmatpush1.msra.mxu0 0.0
  %879 = vmatprep.subr.mxu0 0.0
  %880 = vmatpush1.msra.mxu0 0.0
  %881 = vmatprep.subr.mxu0 0.0
  %882 = vmatpush1.msra.mxu0 0.0
  %883 = vmatprep.mubr.f32.mxu0 0.0
  %884 = vmatmul.mubr.f32.gmra.mrb[0].mxu0 %v817
  %v885 = vpop.f32.mrb[0].mxu0
  %v886 = vadd.f32 0.0, %v885
  %v887 = vpop.f32.mrb[0].mxu0
  %888 = vdwg.mxu0
  %889 = vrot.lane.b32.xlu0 %v800, 126
  %v890 = vpop.permute.xlu0 %889
  %891 = vrot.lane.b32.xlu0 %v801, 126
  %v892 = vpop.permute.xlu0 %891
  %893 = vrot.lane.b32.xlu0 %v802, 126
  %v894 = vpop.permute.xlu0 %893
  %895 = vrot.lane.b32.xlu0 %v803, 126
  %v896 = vpop.permute.xlu0 %895
  %v897 = vmul.f32 %v890, %v70
  %v898 = vmul.f32 %v892, %v70
  %v899 = vmul.f32 %v894, %v70
  %v900 = vmul.f32 %v896, %v70
  %v902 = vsel %vm512, %v47, 0
  %904 = vmatprep.subr.mxu0 0.0
  %905 = vmatpush1.msra.mxu0 %v800
  %906 = vmatprep.subr.mxu0 0.0
  %907 = vmatpush1.msra.mxu0 %v801
  %908 = vmatprep.subr.mxu0 0.0
  %909 = vmatpush1.msra.mxu0 %v802
  %910 = vmatprep.subr.mxu0 0.0
  %911 = vmatpush1.msra.mxu0 %v803
  %912 = vmatprep.subr.mxu0 0.0
  %913 = vmatpush1.msra.mxu0 %v897
  %914 = vmatprep.subr.mxu0 0.0
  %915 = vmatpush1.msra.mxu0 %v898
  %916 = vmatprep.subr.mxu0 0.0
  %917 = vmatpush1.msra.mxu0 %v899
  %918 = vmatprep.subr.mxu0 0.0
  %919 = vmatpush1.msra.mxu0 %v900
  %920 = vmatprep.subr.mxu0 0.0
  %921 = vmatpush1.msra.mxu0 0.0
  %922 = vmatprep.subr.mxu0 0.0
  %923 = vmatpush1.msra.mxu0 0.0
  %924 = vmatprep.subr.mxu0 0.0
  %925 = vmatpush1.msra.mxu0 0.0
  %926 = vmatprep.subr.mxu0 0.0
  %927 = vmatpush1.msra.mxu0 0.0
  %928 = vmatprep.subr.mxu0 0.0
  %929 = vmatpush1.msra.mxu0 0.0
  %930 = vmatprep.subr.mxu0 0.0
  %931 = vmatpush1.msra.mxu0 0.0
  %932 = vmatprep.subr.mxu0 0.0
  %933 = vmatpush1.msra.mxu0 0.0
  %934 = vmatprep.subr.mxu0 0.0
  %935 = vmatpush1.msra.mxu0 0.0
  %936 = vmatprep.subr.mxu0 0.0
  %937 = vmatpush1.msra.mxu0 0.0
  %938 = vmatprep.subr.mxu0 0.0
  %939 = vmatpush1.msra.mxu0 0.0
  %940 = vmatprep.subr.mxu0 0.0
  %941 = vmatpush1.msra.mxu0 0.0
  %942 = vmatprep.subr.mxu0 0.0
  %943 = vmatpush1.msra.mxu0 0.0
  %944 = vmatprep.subr.mxu0 0.0
  %945 = vmatpush1.msra.mxu0 0.0
  %946 = vmatprep.subr.mxu0 0.0
  %947 = vmatpush1.msra.mxu0 0.0
  %948 = vmatprep.subr.mxu0 0.0
  %949 = vmatpush1.msra.mxu0 0.0
  %950 = vmatprep.subr.mxu0 0.0
  %951 = vmatpush1.msra.mxu0 0.0
  %952 = vmatprep.subr.mxu0 0.0
  %953 = vmatpush1.msra.mxu0 0.0
  %954 = vmatprep.subr.mxu0 0.0
  %955 = vmatpush1.msra.mxu0 0.0
  %956 = vmatprep.subr.mxu0 0.0
  %957 = vmatpush1.msra.mxu0 0.0
  %958 = vmatprep.subr.mxu0 0.0
  %959 = vmatpush1.msra.mxu0 0.0
  %960 = vmatprep.subr.mxu0 0.0
  %961 = vmatpush1.msra.mxu0 0.0
  %962 = vmatprep.subr.mxu0 0.0
  %963 = vmatpush1.msra.mxu0 0.0
  %964 = vmatprep.subr.mxu0 0.0
  %965 = vmatpush1.msra.mxu0 0.0
  %966 = vmatprep.subr.mxu0 0.0
  %967 = vmatpush1.msra.mxu0 0.0
  %968 = vmatprep.mubr.f32.mxu0 0.0
  %969 = vmatmul.mubr.f32.gmra.mrb[0].mxu0 %v902
  %v970 = vpop.f32.mrb[0].mxu0
  %v971 = vadd.f32 0.0, %v970
  %v972 = vpop.f32.mrb[0].mxu0
  %973 = vdwg.mxu0
  %v974 = vmul.f32 %v886, %v77
  %975 = vrot.lane.b32.xlu0 %v971, 1
  %v976 = vpop.permute.xlu0 %975
  %v977 = vsub.f32 1.0, %v77
  %v978 = vmul.f32 %v976, %v977
  %v979 = vadd.f32 %v974, %v978
  %980 = vset.pattern.permute.xlu0 2
  %981 = vperm.xlu0 %980, %v52
  %v982 = vpop.permute.xlu0 %981
  %v984 = vlaneseq
  %v985 = vshrl.u32 %v984, 7
  %v986 = vsub.s32 0, %v985
  %v987 = vrot.slane %v982, %v986
  %v988 = vadd.f32 %v979, %v987
  %v989 = vxor.u32 %v988, 2147483648
  %v990 = vmul.f32 %v989, 1.442695
  %v991 = vpow.pop %v990
  %v992 = vadd.f32 %v991, 1.0
  %v993 = vrcp.pop %v992
  %v994 = vmul.f32 1.0, %v993
  %995 = vst [vmem:[%s8] sm:$0x1] %v994
  // Predicated region
  $region34: #{tcn3_forward.1} parent=0 // pred_check
    _
  $region35: #{tcn3_forward.1} parent=0 // pred_check_branch
    %997 = sbr.rel (0) target = $region37
  $region36: #{tcn3_forward.1} parent=0 // pred_region
    _
  $region37: #{tcn3_forward.1} parent=0 // pred_fallthru
    _
  // Predicated region
  $region38: #{tcn3_forward.1} parent=0 // pred_check
    _
  $region39: #{tcn3_forward.1} parent=0 // pred_check_branch
    %999 = sbr.rel (0) target = $region41
  $region40: #{tcn3_forward.1} parent=0 // pred_region
    _
  $region41: #{tcn3_forward.1} parent=0 // pred_fallthru
    _

</llo_original>
